<compile_context>
chip_gen: v6e
topology: v6e:2x2x1
jax: 0.10.0
libtpu: 0.0.40
codegen_flags: <defaults>
</compile_context>

<pallas_src>
import numpy as np

import jax
import jax.numpy as jnp
from jax.experimental import pallas as pl
from jax.experimental.pallas import tpu as pltpu

BN_EPS = 1e-5
LRELU_SLOPE = 0.2
KSIZE = 4
STRIDE = 2


def _out_hw(hw):
    return (hw - KSIZE) // STRIDE + 1


# ---------------------------------------------------------------------------
# Wrapper-side input indexing (pure data rearrangement of the network *input*)
# ---------------------------------------------------------------------------
def _extract_patches_nchw(x, k=KSIZE, s=STRIDE):
    """x: (N, C, H, W) -> (N, Ho*Wo, C*k*k); patch lane order (ci, kh, kw)."""
    n, c, h, w = x.shape
    ho, wo = (h - k) // s + 1, (w - k) // s + 1
    taps = []
    for kh in range(k):
        for kw in range(k):
            taps.append(x[:, :, kh:kh + s * (ho - 1) + 1:s,
                             kw:kw + s * (wo - 1) + 1:s])          # (N, C, Ho, Wo)
    p = jnp.stack(taps, axis=-1)                                   # (N, C, Ho, Wo, k*k)
    p = p.transpose(0, 2, 3, 1, 4)                                 # (N, Ho, Wo, C, k*k)
    return p.reshape(n, ho * wo, c * k * k)


def _conv2_gather_indices(w1, h2, w2, k=KSIZE, s=STRIDE):
    """(h2*w2, k*k) int32: conv1-output spatial index feeding (conv2 pos, conv2 tap)."""
    oh = s * np.arange(h2)[:, None, None, None] + np.arange(k)[None, None, :, None]
    ow = s * np.arange(w2)[None, :, None, None] + np.arange(k)[None, None, None, :]
    return (oh * w1 + ow).reshape(h2 * w2, k * k).astype(np.int32)


# ---------------------------------------------------------------------------
# Fused Pallas kernel: conv1 + BN1 + LReLU + conv2 + BN2 + LReLU + conv3
# ---------------------------------------------------------------------------
def _discriminator_kernel(p1_ref, p1g_ref, w1_ref, w1b_ref, t1_ref,
                          g1_ref, be1_ref, w2_ref, g2_ref, be2_ref,
                          w3m_ref, s3_ref, b3_ref, o_ref):
    f32 = jnp.float32

    def bn_scale_shift(y, gamma_ref, beta_ref):
        # Training-mode BN, single fused pass: sum & sum-of-squares, biased variance.
        inv_cnt = 1.0 / float(y.shape[0])
        mean = jnp.sum(y, axis=0, keepdims=True) * inv_cnt                 # (1, C)
        ex2 = jnp.sum(y * y, axis=0, keepdims=True) * inv_cnt              # (1, C)
        var = ex2 - mean * mean
        scale = gamma_ref[...] * jax.lax.rsqrt(var + BN_EPS)               # (1, C)
        shift = beta_ref[...] - mean * scale
        return scale, shift

    def lrelu(z):
        return jnp.where(z >= 0.0, z, LRELU_SLOPE * z)

    # ---- conv1 on the full grid: only needed for BN1 batch statistics --------
    y1 = jnp.dot(p1_ref[...], w1_ref[...], preferred_element_type=f32)     # (N*169, C1)
    scale1, shift1 = bn_scale_shift(y1, g1_ref, be1_ref)                   # (1, C1)
    # Expand the per-channel BN params to the (conv2-tap, channel) lane layout.
    scale1e = jnp.dot(scale1, t1_ref[...], preferred_element_type=f32)     # (1, 16*C1)
    shift1e = jnp.dot(shift1, t1_ref[...], preferred_element_type=f32)

    # ---- conv1 at the positions conv2 consumes (tap-grouped lanes) -----------
    y1g = jnp.dot(p1g_ref[...], w1b_ref[...], preferred_element_type=f32)  # (N*25, 16*C1)
    a1g = lrelu(y1g * scale1e + shift1e)

    # ---- conv2 + BN2 + LeakyReLU ----------------------------------------------
    y2 = jnp.dot(a1g.astype(jnp.bfloat16), w2_ref[...],
                 preferred_element_type=f32)                               # (N*25, C2)
    scale2, shift2 = bn_scale_shift(y2, g2_ref, be2_ref)
    a2 = lrelu(y2 * scale2 + shift2)

    # ---- conv3: 1 output channel over the 4x4 window of the 5x5 map ----------
    f = a2 * w3m_ref[...]                                                  # (N*25, C2)
    per_sample = jnp.dot(s3_ref[...], f, preferred_element_type=f32)       # (N, C2)
    o_ref[...] = jnp.sum(per_sample, axis=1, keepdims=True) + b3_ref[...]  # (N, 1)


def _fa(shape):
    # Full-array block (block == array dims is always legal), single grid step.
    return pl.BlockSpec(shape, lambda i: (0,) * len(shape))


@jax.jit
def discriminator_forward(image, params):
    n, c, h, w = image.shape
    h1, w1 = _out_hw(h), _out_hw(w)
    h2, w2 = _out_hw(h1), _out_hw(w1)
    assert _out_hw(h2) == 1 and _out_hw(w2) == 1, "final conv must emit one logit"
    kk = KSIZE * KSIZE

    x = image.astype(jnp.bfloat16)
    p1 = _extract_patches_nchw(x)                              # (N, h1*w1, C*16)
    idx = _conv2_gather_indices(w1, h2, w2)                    # (25, 16), static
    p1g = p1[:, idx, :]                                        # (N, 25, 16, C*16)
    p1g = p1g.reshape(n, h2 * w2, kk * p1.shape[-1])           # lanes = (tap, q)
    p1_2d = p1.reshape(n * h1 * w1, p1.shape[-1])              # (N*169, C*16)
    p1g_2d = p1g.reshape(n * h2 * w2, p1g.shape[-1])           # (N*25, 256*C)

    w3m = jnp.tile(params["w3m"], (n, 1))                      # (N*25, C2)
    s3 = jnp.asarray(np.kron(np.eye(n, dtype=np.float32),
                             np.ones((1, h2 * w2), np.float32)))  # (N, N*25)

    kin = [p1_2d, p1g_2d, params["w1mat"], params["w1blk"], params["t1"],
           params["g1"], params["be1"], params["w2flat"], params["g2"],
           params["be2"], w3m, s3, params["b3k"]]

    c1 = params["w1mat"].shape[1]
    c2 = params["w2flat"].shape[1]
    r1, r2 = p1_2d.shape[0], p1g_2d.shape[0]
    flops = 2 * (r1 * p1_2d.shape[1] * c1
                 + r2 * p1g_2d.shape[1] * (kk * c1)
                 + r2 * (kk * c1) * c2
                 + n * r2 * c2)
    bytes_accessed = sum(int(a.size) * a.dtype.itemsize for a in kin) + n * 4

    return pl.pallas_call(
        _discriminator_kernel,
        out_shape=jax.ShapeDtypeStruct((n, 1), jnp.float32),
        grid=(1,),
        in_specs=[_fa(a.shape) for a in kin],
        out_specs=_fa((n, 1)),
        compiler_params=pltpu.CompilerParams(vmem_limit_bytes=16 * 1024 * 1024),
        cost_estimate=pl.CostEstimate(flops=flops, transcendentals=c1 + c2,
                                      bytes_accessed=bytes_accessed),
    )(*kin)


# ---------------------------------------------------------------------------
# Parameters (PyTorch layout) + compact kernel-side operands derived at init
# ---------------------------------------------------------------------------
def init_params(key, im_chan=1, hidden_dim=16, image_hw=28):
    k = jax.random.split(key, 10)
    c1, c2 = hidden_dim, hidden_dim * 2
    h1 = _out_hw(image_hw)
    h2 = _out_hw(h1)
    kk = KSIZE * KSIZE

    # PyTorch-shaped parameters (Cout, Cin, 4, 4) / (Cout,); synthetic init.
    w1 = 0.05 * jax.random.normal(k[0], (c1, im_chan, KSIZE, KSIZE), jnp.float32)
    b1 = 0.10 * jax.random.normal(k[1], (c1,), jnp.float32)
    w2 = 0.05 * jax.random.normal(k[2], (c2, c1, KSIZE, KSIZE), jnp.float32)
    b2 = 0.10 * jax.random.normal(k[3], (c2,), jnp.float32)
    w3 = 0.05 * jax.random.normal(k[4], (1, c2, KSIZE, KSIZE), jnp.float32)
    b3 = 0.10 * jax.random.normal(k[5], (1,), jnp.float32)
    g1 = 1.0 + 0.1 * jax.random.normal(k[6], (c1,), jnp.float32)
    be1 = 0.1 * jax.random.normal(k[7], (c1,), jnp.float32)
    g2 = 1.0 + 0.1 * jax.random.normal(k[8], (c2,), jnp.float32)
    be2 = 0.1 * jax.random.normal(k[9], (c2,), jnp.float32)

    w1_np = np.asarray(w1, np.float32)
    w2_np = np.asarray(w2, np.float32)
    w3_np = np.asarray(w3, np.float32)

    # conv1 as a matmul: rows ordered (ci, kh, kw) to match the patch lane order.
    w1mat = w1_np.transpose(1, 2, 3, 0).reshape(im_chan * kk, c1)
    # conv1 applied per conv2-tap block: block-diagonal with 16 copies of w1mat.
    w1blk = np.kron(np.eye(kk, dtype=np.float32), w1mat)         # (16*Ci*16, 16*C1)
    # Expands per-channel BN1 params to the (tap, channel) lane layout.
    t1 = np.tile(np.eye(c1, dtype=np.float32), (1, kk))          # (C1, 16*C1)
    # conv2 as a matmul: rows ordered (kh, kw, ci) == Y1g lane order (tap*C1 + ci).
    w2flat = w2_np.transpose(2, 3, 1, 0).reshape(kk * c1, c2)
    # conv3 weight laid out over the (5x5 spatial, C2) layer-2 output (4x4 window).
    w3m = np.zeros((h2 * h2, c2), np.float32)
    for oh in range(KSIZE):
        for ow in range(KSIZE):
            w3m[oh * h2 + ow, :] = w3_np[0, :, oh, ow]

    return {
        # Compact kernel-side operands.  conv1/conv2 biases are intentionally NOT
        # materialized for the kernel: a bias added before training-mode BatchNorm
        # is exactly cancelled by the mean subtraction (see reference check below).
        "w1mat": jnp.asarray(w1mat, jnp.bfloat16),
        "w1blk": jnp.asarray(w1blk, jnp.bfloat16),
        "t1": jnp.asarray(t1, jnp.float32),
        "w2flat": jnp.asarray(w2flat, jnp.bfloat16),
        "w3m": jnp.asarray(w3m, jnp.float32),
        "b3k": jnp.asarray(b3, jnp.float32).reshape(1, 1),
        "g1": g1.reshape(1, c1), "be1": be1.reshape(1, c1),
        "g2": g2.reshape(1, c2), "be2": be2.reshape(1, c2),
        # Original PyTorch-layout parameters (for the pure-JAX reference).
        "w1": w1, "b1": b1, "w2": w2, "b2": b2, "w3": w3, "b3": b3,
    }


# ---------------------------------------------------------------------------
# Pure-JAX reference of the PyTorch module (training-mode BatchNorm)
# ---------------------------------------------------------------------------
def reference_forward(image, params):
    def conv(x_, w_, b_):
        y = jax.lax.conv_general_dilated(
            x_, w_, (STRIDE, STRIDE), "VALID",
            dimension_numbers=("NCHW", "OIHW", "NCHW"))
        return y + b_.reshape(1, -1, 1, 1)

    def bn(x_, g_, b_):
        m = jnp.mean(x_, axis=(0, 2, 3), keepdims=True)
        v = jnp.mean((x_ - m) ** 2, axis=(0, 2, 3), keepdims=True)   # biased var
        return (x_ - m) * jax.lax.rsqrt(v + BN_EPS) * g_.reshape(1, -1, 1, 1) \
            + b_.reshape(1, -1, 1, 1)

    def lrelu(x_):
        return jnp.where(x_ >= 0, x_, LRELU_SLOPE * x_)

    bf = lambda a: a.astype(jnp.bfloat16).astype(jnp.float32)   # mirror kernel rounding
    x = bf(image)
    h = lrelu(bn(conv(x, bf(params["w1"]), params["b1"]), params["g1"], params["be1"]))
    h = lrelu(bn(conv(h, bf(params["w2"]), params["b2"]), params["g2"], params["be2"]))
    h = conv(h, params["w3"], params["b3"])
    return h.reshape(h.shape[0], -1)


if __name__ == "__main__":
    key = jax.random.PRNGKey(0)
    k_img, k_par = jax.random.split(key)

    # MNIST-like input consistent with im_chan=1: 28 -> 13 -> 5 -> 1.
    image = jax.random.normal(k_img, (2, 1, 28, 28), jnp.float32)
    params = init_params(k_par, im_chan=1, hidden_dim=16, image_hw=28)

    pred = discriminator_forward(image, params)
    pred = jax.block_until_ready(pred)
    assert pred.shape == (2, 1), pred.shape
    assert bool(jnp.all(jnp.isfinite(pred)))

    # Reference includes the conv1/conv2 biases the kernel folds into BN.
    ref = reference_forward(image, params)
    err = float(jnp.max(jnp.abs(pred - ref)))
    assert err < 5e-2, f"kernel vs reference mismatch: {err}"

    print("KERNEL_OK")
</pallas_src>

<mosaic_0001>
module attributes {stable_mosaic.version = 11 : i64} {
  func.func @_discriminator_kernel(%arg0: i32, %arg1: memref<338x16xbf16, #tpu.memory_space<vmem>>, %arg2: memref<50x256xbf16, #tpu.memory_space<vmem>>, %arg3: memref<16x16xbf16, #tpu.memory_space<vmem>>, %arg4: memref<256x256xbf16, #tpu.memory_space<vmem>>, %arg5: memref<16x256xf32, #tpu.memory_space<vmem>>, %arg6: memref<1x16xf32, #tpu.memory_space<vmem>>, %arg7: memref<1x16xf32, #tpu.memory_space<vmem>>, %arg8: memref<256x32xbf16, #tpu.memory_space<vmem>>, %arg9: memref<1x32xf32, #tpu.memory_space<vmem>>, %arg10: memref<1x32xf32, #tpu.memory_space<vmem>>, %arg11: memref<50x32xf32, #tpu.memory_space<vmem>>, %arg12: memref<2x50xf32, #tpu.memory_space<vmem>>, %arg13: memref<1x1xf32, #tpu.memory_space<vmem>>, %arg14: memref<2x1xf32, #tpu.memory_space<vmem>>) attributes {dimension_semantics = [#tpu.dimension_semantics<arbitrary>], iteration_bounds = array<i64: 1>, scalar_prefetch = 0 : i64, scratch_operands = 0 : i64, tpu.core_type = #tpu.core_type<tc>, window_params = [{pipeline_mode = #tpu.pipeline_mode<synchronous>, transform_indices = @transform_0, window_bounds = array<i64: 338, 16>}, {pipeline_mode = #tpu.pipeline_mode<synchronous>, transform_indices = @transform_1, window_bounds = array<i64: 50, 256>}, {pipeline_mode = #tpu.pipeline_mode<synchronous>, transform_indices = @transform_2, window_bounds = array<i64: 16, 16>}, {pipeline_mode = #tpu.pipeline_mode<synchronous>, transform_indices = @transform_3, window_bounds = array<i64: 256, 256>}, {pipeline_mode = #tpu.pipeline_mode<synchronous>, transform_indices = @transform_4, window_bounds = array<i64: 16, 256>}, {pipeline_mode = #tpu.pipeline_mode<synchronous>, transform_indices = @transform_5, window_bounds = array<i64: 1, 16>}, {pipeline_mode = #tpu.pipeline_mode<synchronous>, transform_indices = @transform_6, window_bounds = array<i64: 1, 16>}, {pipeline_mode = #tpu.pipeline_mode<synchronous>, transform_indices = @transform_7, window_bounds = array<i64: 256, 32>}, {pipeline_mode = #tpu.pipeline_mode<synchronous>, transform_indices = @transform_8, window_bounds = array<i64: 1, 32>}, {pipeline_mode = #tpu.pipeline_mode<synchronous>, transform_indices = @transform_9, window_bounds = array<i64: 1, 32>}, {pipeline_mode = #tpu.pipeline_mode<synchronous>, transform_indices = @transform_10, window_bounds = array<i64: 50, 32>}, {pipeline_mode = #tpu.pipeline_mode<synchronous>, transform_indices = @transform_11, window_bounds = array<i64: 2, 50>}, {pipeline_mode = #tpu.pipeline_mode<synchronous>, transform_indices = @transform_12, window_bounds = array<i64: 1, 1>}, {pipeline_mode = #tpu.pipeline_mode<synchronous>, transform_indices = @transform_13, window_bounds = array<i64: 2, 1>}]} {
    %c0 = arith.constant 0 : index
    %c0_0 = arith.constant 0 : index
    %0 = vector.load %arg1[%c0, %c0_0] : memref<338x16xbf16, #tpu.memory_space<vmem>>, vector<338x16xbf16>
    %c0_1 = arith.constant 0 : index
    %c0_2 = arith.constant 0 : index
    %1 = vector.load %arg3[%c0_1, %c0_2] : memref<16x16xbf16, #tpu.memory_space<vmem>>, vector<16x16xbf16>
    %cst = arith.constant dense<0.000000e+00> : vector<338x16xf32>
    %2 = tpu.matmul %0, %1, %cst {dimension_numbers = #tpu.dot_dimension_numbers<[1], [0], [0], [1], [0, 0, 1, 1], [], []>} : vector<338x16xbf16>, vector<16x16xbf16>, vector<338x16xf32> -> vector<338x16xf32>
    %cst_3 = arith.constant dense<0.000000e+00> : vector<16xf32>
    %3 = vector.multi_reduction <add>, %2, %cst_3 [0] : vector<338x16xf32> to vector<16xf32>
    %4 = vector.shape_cast %3 : vector<16xf32> to vector<1x16xf32>
    %cst_4 = arith.constant 2.958580e-03 : f32
    %5 = vector.broadcast %cst_4 : f32 to vector<1x16xf32>
    %6 = arith.mulf %4, %5 : vector<1x16xf32>
    %7 = arith.mulf %2, %2 : vector<338x16xf32>
    %cst_5 = arith.constant dense<0.000000e+00> : vector<16xf32>
    %8 = vector.multi_reduction <add>, %7, %cst_5 [0] : vector<338x16xf32> to vector<16xf32>
    %9 = vector.shape_cast %8 : vector<16xf32> to vector<1x16xf32>
    %cst_6 = arith.constant 2.958580e-03 : f32
    %10 = vector.broadcast %cst_6 : f32 to vector<1x16xf32>
    %11 = arith.mulf %9, %10 : vector<1x16xf32>
    %12 = arith.mulf %6, %6 : vector<1x16xf32>
    %13 = arith.subf %11, %12 : vector<1x16xf32>
    %c0_7 = arith.constant 0 : index
    %c0_8 = arith.constant 0 : index
    %14 = vector.load %arg6[%c0_7, %c0_8] : memref<1x16xf32, #tpu.memory_space<vmem>>, vector<1x16xf32>
    %cst_9 = arith.constant 9.99999974E-6 : f32
    %15 = vector.broadcast %cst_9 : f32 to vector<1x16xf32>
    %16 = arith.addf %13, %15 : vector<1x16xf32>
    %17 = math.rsqrt %16 : vector<1x16xf32>
    %18 = arith.mulf %14, %17 : vector<1x16xf32>
    %c0_10 = arith.constant 0 : index
    %c0_11 = arith.constant 0 : index
    %19 = vector.load %arg7[%c0_10, %c0_11] : memref<1x16xf32, #tpu.memory_space<vmem>>, vector<1x16xf32>
    %20 = arith.mulf %6, %18 : vector<1x16xf32>
    %21 = arith.subf %19, %20 : vector<1x16xf32>
    %c0_12 = arith.constant 0 : index
    %c0_13 = arith.constant 0 : index
    %22 = vector.load %arg5[%c0_12, %c0_13] : memref<16x256xf32, #tpu.memory_space<vmem>>, vector<16x256xf32>
    %cst_14 = arith.constant dense<0.000000e+00> : vector<1x256xf32>
    %23 = tpu.matmul %18, %22, %cst_14 {dimension_numbers = #tpu.dot_dimension_numbers<[1], [0], [0], [1], [0, 0, 1, 1], [], []>} : vector<1x16xf32>, vector<16x256xf32>, vector<1x256xf32> -> vector<1x256xf32>
    %c0_15 = arith.constant 0 : index
    %c0_16 = arith.constant 0 : index
    %24 = vector.load %arg5[%c0_15, %c0_16] : memref<16x256xf32, #tpu.memory_space<vmem>>, vector<16x256xf32>
    %cst_17 = arith.constant dense<0.000000e+00> : vector<1x256xf32>
    %25 = tpu.matmul %21, %24, %cst_17 {dimension_numbers = #tpu.dot_dimension_numbers<[1], [0], [0], [1], [0, 0, 1, 1], [], []>} : vector<1x16xf32>, vector<16x256xf32>, vector<1x256xf32> -> vector<1x256xf32>
    %c0_18 = arith.constant 0 : index
    %c0_19 = arith.constant 0 : index
    %26 = vector.load %arg2[%c0_18, %c0_19] : memref<50x256xbf16, #tpu.memory_space<vmem>>, vector<50x256xbf16>
    %c0_20 = arith.constant 0 : index
    %c0_21 = arith.constant 0 : index
    %27 = vector.load %arg4[%c0_20, %c0_21] : memref<256x256xbf16, #tpu.memory_space<vmem>>, vector<256x256xbf16>
    %cst_22 = arith.constant dense<0.000000e+00> : vector<50x256xf32>
    %28 = tpu.matmul %26, %27, %cst_22 {dimension_numbers = #tpu.dot_dimension_numbers<[1], [0], [0], [1], [0, 0, 1, 1], [], []>} : vector<50x256xbf16>, vector<256x256xbf16>, vector<50x256xf32> -> vector<50x256xf32>
    %29 = vector.broadcast %23 : vector<1x256xf32> to vector<50x256xf32>
    %30 = arith.mulf %28, %29 : vector<50x256xf32>
    %31 = vector.broadcast %25 : vector<1x256xf32> to vector<50x256xf32>
    %32 = arith.addf %30, %31 : vector<50x256xf32>
    %cst_23 = arith.constant 0.000000e+00 : f32
    %33 = vector.broadcast %cst_23 : f32 to vector<50x256xf32>
    %34 = arith.cmpf oge, %32, %33 : vector<50x256xf32>
    %cst_24 = arith.constant 2.000000e-01 : f32
    %35 = vector.broadcast %cst_24 : f32 to vector<50x256xf32>
    %36 = arith.mulf %35, %32 : vector<50x256xf32>
    %37 = arith.select %34, %32, %36 : vector<50x256xi1>, vector<50x256xf32>
    %38 = arith.truncf %37 : vector<50x256xf32> to vector<50x256xbf16>
    %c0_25 = arith.constant 0 : index
    %c0_26 = arith.constant 0 : index
    %39 = vector.load %arg8[%c0_25, %c0_26] : memref<256x32xbf16, #tpu.memory_space<vmem>>, vector<256x32xbf16>
    %cst_27 = arith.constant dense<0.000000e+00> : vector<50x32xf32>
    %40 = tpu.matmul %38, %39, %cst_27 {dimension_numbers = #tpu.dot_dimension_numbers<[1], [0], [0], [1], [0, 0, 1, 1], [], []>} : vector<50x256xbf16>, vector<256x32xbf16>, vector<50x32xf32> -> vector<50x32xf32>
    %cst_28 = arith.constant dense<0.000000e+00> : vector<32xf32>
    %41 = vector.multi_reduction <add>, %40, %cst_28 [0] : vector<50x32xf32> to vector<32xf32>
    %42 = vector.shape_cast %41 : vector<32xf32> to vector<1x32xf32>
    %cst_29 = arith.constant 2.000000e-02 : f32
    %43 = vector.broadcast %cst_29 : f32 to vector<1x32xf32>
    %44 = arith.mulf %42, %43 : vector<1x32xf32>
    %45 = arith.mulf %40, %40 : vector<50x32xf32>
    %cst_30 = arith.constant dense<0.000000e+00> : vector<32xf32>
    %46 = vector.multi_reduction <add>, %45, %cst_30 [0] : vector<50x32xf32> to vector<32xf32>
    %47 = vector.shape_cast %46 : vector<32xf32> to vector<1x32xf32>
    %cst_31 = arith.constant 2.000000e-02 : f32
    %48 = vector.broadcast %cst_31 : f32 to vector<1x32xf32>
    %49 = arith.mulf %47, %48 : vector<1x32xf32>
    %50 = arith.mulf %44, %44 : vector<1x32xf32>
    %51 = arith.subf %49, %50 : vector<1x32xf32>
    %c0_32 = arith.constant 0 : index
    %c0_33 = arith.constant 0 : index
    %52 = vector.load %arg9[%c0_32, %c0_33] : memref<1x32xf32, #tpu.memory_space<vmem>>, vector<1x32xf32>
    %cst_34 = arith.constant 9.99999974E-6 : f32
    %53 = vector.broadcast %cst_34 : f32 to vector<1x32xf32>
    %54 = arith.addf %51, %53 : vector<1x32xf32>
    %55 = math.rsqrt %54 : vector<1x32xf32>
    %56 = arith.mulf %52, %55 : vector<1x32xf32>
    %c0_35 = arith.constant 0 : index
    %c0_36 = arith.constant 0 : index
    %57 = vector.load %arg10[%c0_35, %c0_36] : memref<1x32xf32, #tpu.memory_space<vmem>>, vector<1x32xf32>
    %58 = arith.mulf %44, %56 : vector<1x32xf32>
    %59 = arith.subf %57, %58 : vector<1x32xf32>
    %60 = vector.broadcast %56 : vector<1x32xf32> to vector<50x32xf32>
    %61 = arith.mulf %40, %60 : vector<50x32xf32>
    %62 = vector.broadcast %59 : vector<1x32xf32> to vector<50x32xf32>
    %63 = arith.addf %61, %62 : vector<50x32xf32>
    %cst_37 = arith.constant 0.000000e+00 : f32
    %64 = vector.broadcast %cst_37 : f32 to vector<50x32xf32>
    %65 = arith.cmpf oge, %63, %64 : vector<50x32xf32>
    %cst_38 = arith.constant 2.000000e-01 : f32
    %66 = vector.broadcast %cst_38 : f32 to vector<50x32xf32>
    %67 = arith.mulf %66, %63 : vector<50x32xf32>
    %68 = arith.select %65, %63, %67 : vector<50x32xi1>, vector<50x32xf32>
    %c0_39 = arith.constant 0 : index
    %c0_40 = arith.constant 0 : index
    %69 = vector.load %arg11[%c0_39, %c0_40] : memref<50x32xf32, #tpu.memory_space<vmem>>, vector<50x32xf32>
    %70 = arith.mulf %68, %69 : vector<50x32xf32>
    %c0_41 = arith.constant 0 : index
    %c0_42 = arith.constant 0 : index
    %71 = vector.load %arg12[%c0_41, %c0_42] : memref<2x50xf32, #tpu.memory_space<vmem>>, vector<2x50xf32>
    %cst_43 = arith.constant dense<0.000000e+00> : vector<2x32xf32>
    %72 = tpu.matmul %71, %70, %cst_43 {dimension_numbers = #tpu.dot_dimension_numbers<[1], [0], [0], [1], [0, 0, 1, 1], [], []>} : vector<2x50xf32>, vector<50x32xf32>, vector<2x32xf32> -> vector<2x32xf32>
    %cst_44 = arith.constant dense<0.000000e+00> : vector<2xf32>
    %73 = vector.multi_reduction <add>, %72, %cst_44 [1] : vector<2x32xf32> to vector<2xf32>
    %74 = vector.shape_cast %73 : vector<2xf32> to vector<2x1xf32>
    %c0_45 = arith.constant 0 : index
    %c0_46 = arith.constant 0 : index
    %75 = vector.load %arg13[%c0_45, %c0_46] : memref<1x1xf32, #tpu.memory_space<vmem>>, vector<1x1xf32>
    %76 = vector.broadcast %75 : vector<1x1xf32> to vector<2x1xf32>
    %77 = arith.addf %74, %76 : vector<2x1xf32>
    %c0_47 = arith.constant 0 : index
    %c0_48 = arith.constant 0 : index
    %78 = vector.load %arg14[%c0_47, %c0_48] : memref<2x1xf32, #tpu.memory_space<vmem>>, vector<2x1xf32>
    tpu.vector_store %arg14[%c0_47, %c0_48], %77 {strides = array<i32>} : memref<2x1xf32, #tpu.memory_space<vmem>>, vector<2x1xf32>,
    return
  }
  func.func @transform_0(%arg0: i32) -> (i32, i32) {
    %c0_i32 = arith.constant 0 : i32
    %c0_i32_0 = arith.constant 0 : i32
    %c0_i32_1 = arith.constant 0 : i32
    return %c0_i32, %c0_i32_0 : i32, i32
  }
  func.func @transform_1(%arg0: i32) -> (i32, i32) {
    %c0_i32 = arith.constant 0 : i32
    %c0_i32_0 = arith.constant 0 : i32
    %c0_i32_1 = arith.constant 0 : i32
    return %c0_i32, %c0_i32_0 : i32, i32
  }
  func.func @transform_2(%arg0: i32) -> (i32, i32) {
    %c0_i32 = arith.constant 0 : i32
    %c0_i32_0 = arith.constant 0 : i32
    %c0_i32_1 = arith.constant 0 : i32
    return %c0_i32, %c0_i32_0 : i32, i32
  }
  func.func @transform_3(%arg0: i32) -> (i32, i32) {
    %c0_i32 = arith.constant 0 : i32
    %c0_i32_0 = arith.constant 0 : i32
    %c0_i32_1 = arith.constant 0 : i32
    return %c0_i32, %c0_i32_0 : i32, i32
  }
  func.func @transform_4(%arg0: i32) -> (i32, i32) {
    %c0_i32 = arith.constant 0 : i32
    %c0_i32_0 = arith.constant 0 : i32
    %c0_i32_1 = arith.constant 0 : i32
    return %c0_i32, %c0_i32_0 : i32, i32
  }
  func.func @transform_5(%arg0: i32) -> (i32, i32) {
    %c0_i32 = arith.constant 0 : i32
    %c0_i32_0 = arith.constant 0 : i32
    %c0_i32_1 = arith.constant 0 : i32
    return %c0_i32, %c0_i32_0 : i32, i32
  }
  func.func @transform_6(%arg0: i32) -> (i32, i32) {
    %c0_i32 = arith.constant 0 : i32
    %c0_i32_0 = arith.constant 0 : i32
    %c0_i32_1 = arith.constant 0 : i32
    return %c0_i32, %c0_i32_0 : i32, i32
  }
  func.func @transform_7(%arg0: i32) -> (i32, i32) {
    %c0_i32 = arith.constant 0 : i32
    %c0_i32_0 = arith.constant 0 : i32
    %c0_i32_1 = arith.constant 0 : i32
    return %c0_i32, %c0_i32_0 : i32, i32
  }
  func.func @transform_8(%arg0: i32) -> (i32, i32) {
    %c0_i32 = arith.constant 0 : i32
    %c0_i32_0 = arith.constant 0 : i32
    %c0_i32_1 = arith.constant 0 : i32
    return %c0_i32, %c0_i32_0 : i32, i32
  }
  func.func @transform_9(%arg0: i32) -> (i32, i32) {
    %c0_i32 = arith.constant 0 : i32
    %c0_i32_0 = arith.constant 0 : i32
    %c0_i32_1 = arith.constant 0 : i32
    return %c0_i32, %c0_i32_0 : i32, i32
  }
  func.func @transform_10(%arg0: i32) -> (i32, i32) {
    %c0_i32 = arith.constant 0 : i32
    %c0_i32_0 = arith.constant 0 : i32
    %c0_i32_1 = arith.constant 0 : i32
    return %c0_i32, %c0_i32_0 : i32, i32
  }
  func.func @transform_11(%arg0: i32) -> (i32, i32) {
    %c0_i32 = arith.constant 0 : i32
    %c0_i32_0 = arith.constant 0 : i32
    %c0_i32_1 = arith.constant 0 : i32
    return %c0_i32, %c0_i32_0 : i32, i32
  }
  func.func @transform_12(%arg0: i32) -> (i32, i32) {
    %c0_i32 = arith.constant 0 : i32
    %c0_i32_0 = arith.constant 0 : i32
    %c0_i32_1 = arith.constant 0 : i32
    return %c0_i32, %c0_i32_0 : i32, i32
  }
  func.func @transform_13(%arg0: i32) -> (i32, i32) {
    %c0_i32 = arith.constant 0 : i32
    %c0_i32_0 = arith.constant 0 : i32
    %c0_i32_1 = arith.constant 0 : i32
    return %c0_i32, %c0_i32_0 : i32, i32
  }
}

</mosaic_0001>

<llo_original>
// kernel: tile.9
$region0: #{tile.9}
  %s0 = inlined_call_operand.vmem [shape: f32[2,25,32], index: 0, kind: input, shape index: {}]
  %s1 = inlined_call_operand.vmem [shape: f32[50,32], index: 1, kind: output, shape index: {}]
  $region1: #{tile.9} parent=0
    #allocation0 [shape = 'u8[131072]{0}', space=vmem, size = 0x20000, scoped, tag = 'scoped mem for input reshape']
    %s3 = sshll.u32 1, 2
    %s4 = ssub.s32 %s3, 1
    %s5 = smul.addr 2, 31
    %s6 = scalar_lea.vmem %s0, %s5
    %v7 = vld [vmem:[%s6] sm:%s4]
    %s8 = scalar_lea.vmem [#allocation0], 248
    %9 = vst [vmem:[%s8] sm:%s4] %v7
    %s10 = smul.addr 2, 30
    %s11 = scalar_lea.vmem %s0, %s10
    %v12 = vld [vmem:[%s11] sm:%s4]
    %s13 = scalar_lea.vmem [#allocation0], 240
    %14 = vst [vmem:[%s13] sm:%s4] %v12
    %s15 = smul.addr 2, 29
    %s16 = scalar_lea.vmem %s0, %s15
    %v17 = vld [vmem:[%s16] sm:%s4]
    %s18 = scalar_lea.vmem [#allocation0], 232
    %19 = vst [vmem:[%s18] sm:%s4] %v17
    %s20 = smul.addr 2, 28
    %s21 = scalar_lea.vmem %s0, %s20
    %v22 = vld [vmem:[%s21] sm:%s4]
    %s23 = scalar_lea.vmem [#allocation0], 224
    %24 = vst [vmem:[%s23] sm:%s4] %v22
    %s25 = smul.addr 2, 27
    %s26 = scalar_lea.vmem %s0, %s25
    %v27 = vld [vmem:[%s26] sm:%s4]
    %s28 = scalar_lea.vmem [#allocation0], 216
    %29 = vst [vmem:[%s28] sm:%s4] %v27
    %s30 = smul.addr 2, 26
    %s31 = scalar_lea.vmem %s0, %s30
    %v32 = vld [vmem:[%s31] sm:%s4]
    %s33 = scalar_lea.vmem [#allocation0], 208
    %34 = vst [vmem:[%s33] sm:%s4] %v32
    %s35 = smul.addr 2, 25
    %s36 = scalar_lea.vmem %s0, %s35
    %v37 = vld [vmem:[%s36] sm:%s4]
    %s38 = scalar_lea.vmem [#allocation0], 200
    %39 = vst [vmem:[%s38] sm:%s4] %v37
    %s40 = smul.addr 2, 24
    %s41 = scalar_lea.vmem %s0, %s40
    %v42 = vld [vmem:[%s41] sm:%s4]
    %s43 = scalar_lea.vmem [#allocation0], 192
    %44 = vst [vmem:[%s43] sm:%s4] %v42
    %s45 = smul.addr 2, 23
    %s46 = scalar_lea.vmem %s0, %s45
    %v47 = vld [vmem:[%s46] sm:%s4]
    %s48 = scalar_lea.vmem [#allocation0], 184
    %49 = vst [vmem:[%s48] sm:%s4] %v47
    %s50 = smul.addr 2, 22
    %s51 = scalar_lea.vmem %s0, %s50
    %v52 = vld [vmem:[%s51] sm:%s4]
    %s53 = scalar_lea.vmem [#allocation0], 176
    %54 = vst [vmem:[%s53] sm:%s4] %v52
    %s55 = smul.addr 2, 21
    %s56 = scalar_lea.vmem %s0, %s55
    %v57 = vld [vmem:[%s56] sm:%s4]
    %s58 = scalar_lea.vmem [#allocation0], 168
    %59 = vst [vmem:[%s58] sm:%s4] %v57
    %s60 = smul.addr 2, 20
    %s61 = scalar_lea.vmem %s0, %s60
    %v62 = vld [vmem:[%s61] sm:%s4]
    %s63 = scalar_lea.vmem [#allocation0], 160
    %64 = vst [vmem:[%s63] sm:%s4] %v62
    %s65 = smul.addr 2, 19
    %s66 = scalar_lea.vmem %s0, %s65
    %v67 = vld [vmem:[%s66] sm:%s4]
    %s68 = scalar_lea.vmem [#allocation0], 152
    %69 = vst [vmem:[%s68] sm:%s4] %v67
    %s70 = smul.addr 2, 18
    %s71 = scalar_lea.vmem %s0, %s70
    %v72 = vld [vmem:[%s71] sm:%s4]
    %s73 = scalar_lea.vmem [#allocation0], 144
    %74 = vst [vmem:[%s73] sm:%s4] %v72
    %s75 = smul.addr 2, 17
    %s76 = scalar_lea.vmem %s0, %s75
    %v77 = vld [vmem:[%s76] sm:%s4]
    %s78 = scalar_lea.vmem [#allocation0], 136
    %79 = vst [vmem:[%s78] sm:%s4] %v77
    %s80 = smul.addr 2, 16
    %s81 = scalar_lea.vmem %s0, %s80
    %v82 = vld [vmem:[%s81] sm:%s4]
    %s83 = scalar_lea.vmem [#allocation0], 128
    %84 = vst [vmem:[%s83] sm:%s4] %v82
    %s85 = smul.addr 2, 15
    %s86 = scalar_lea.vmem %s0, %s85
    %v87 = vld [vmem:[%s86] sm:%s4]
    %s88 = scalar_lea.vmem [#allocation0], 120
    %89 = vst [vmem:[%s88] sm:%s4] %v87
    %s90 = smul.addr 2, 14
    %s91 = scalar_lea.vmem %s0, %s90
    %v92 = vld [vmem:[%s91] sm:%s4]
    %s93 = scalar_lea.vmem [#allocation0], 112
    %94 = vst [vmem:[%s93] sm:%s4] %v92
    %s95 = smul.addr 2, 13
    %s96 = scalar_lea.vmem %s0, %s95
    %v97 = vld [vmem:[%s96] sm:%s4]
    %s98 = scalar_lea.vmem [#allocation0], 104
    %99 = vst [vmem:[%s98] sm:%s4] %v97
    %s100 = smul.addr 2, 12
    %s101 = scalar_lea.vmem %s0, %s100
    %v102 = vld [vmem:[%s101] sm:%s4]
    %s103 = scalar_lea.vmem [#allocation0], 96
    %104 = vst [vmem:[%s103] sm:%s4] %v102
    %s105 = smul.addr 2, 11
    %s106 = scalar_lea.vmem %s0, %s105
    %v107 = vld [vmem:[%s106] sm:%s4]
    %s108 = scalar_lea.vmem [#allocation0], 88
    %109 = vst [vmem:[%s108] sm:%s4] %v107
    %s110 = smul.addr 2, 10
    %s111 = scalar_lea.vmem %s0, %s110
    %v112 = vld [vmem:[%s111] sm:%s4]
    %s113 = scalar_lea.vmem [#allocation0], 80
    %114 = vst [vmem:[%s113] sm:%s4] %v112
    %s115 = smul.addr 2, 9
    %s116 = scalar_lea.vmem %s0, %s115
    %v117 = vld [vmem:[%s116] sm:%s4]
    %s118 = scalar_lea.vmem [#allocation0], 72
    %119 = vst [vmem:[%s118] sm:%s4] %v117
    %s120 = smul.addr 2, 8
    %s121 = scalar_lea.vmem %s0, %s120
    %v122 = vld [vmem:[%s121] sm:%s4]
    %s123 = scalar_lea.vmem [#allocation0], 64
    %124 = vst [vmem:[%s123] sm:%s4] %v122
    %s125 = smul.addr 2, 7
    %s126 = scalar_lea.vmem %s0, %s125
    %v127 = vld [vmem:[%s126] sm:%s4]
    %s128 = scalar_lea.vmem [#allocation0], 56
    %129 = vst [vmem:[%s128] sm:%s4] %v127
    %s130 = smul.addr 2, 6
    %s131 = scalar_lea.vmem %s0, %s130
    %v132 = vld [vmem:[%s131] sm:%s4]
    %s133 = scalar_lea.vmem [#allocation0], 48
    %134 = vst [vmem:[%s133] sm:%s4] %v132
    %s135 = smul.addr 2, 5
    %s136 = scalar_lea.vmem %s0, %s135
    %v137 = vld [vmem:[%s136] sm:%s4]
    %s138 = scalar_lea.vmem [#allocation0], 40
    %139 = vst [vmem:[%s138] sm:%s4] %v137
    %s140 = smul.addr 2, 4
    %s141 = scalar_lea.vmem %s0, %s140
    %v142 = vld [vmem:[%s141] sm:%s4]
    %s143 = scalar_lea.vmem [#allocation0], 32
    %144 = vst [vmem:[%s143] sm:%s4] %v142
    %s145 = smul.addr 2, 3
    %s146 = scalar_lea.vmem %s0, %s145
    %v147 = vld [vmem:[%s146] sm:%s4]
    %s148 = scalar_lea.vmem [#allocation0], 24
    %149 = vst [vmem:[%s148] sm:%s4] %v147
    %s150 = smul.addr 2, 2
    %s151 = scalar_lea.vmem %s0, %s150
    %v152 = vld [vmem:[%s151] sm:%s4]
    %s153 = scalar_lea.vmem [#allocation0], 16
    %154 = vst [vmem:[%s153] sm:%s4] %v152
    %s155 = scalar_lea.vmem %s0, 2
    %v156 = vld [vmem:[%s155] sm:%s4]
    %s157 = scalar_lea.vmem [#allocation0], 8
    %158 = vst [vmem:[%s157] sm:%s4] %v156
    %v159 = vld [vmem:[%s0] sm:%s4]
    %160 = vst [vmem:[#allocation0] sm:%s4] %v159
    %v161 = vld [vmem:[#allocation0] ss:$8 sm:$0xf]
    %v162 = vld [vmem:[#allocation0] ss:$8 sm:$0xf0]
    %vm163 = vcmask 1047556
    %v164 = vsel %vm163, %v162, %v161
    %vm165 = vcmask 203776
    %166 = vst.msk [vmem:[%s1] sm:$0xff] %vm165, %v164
    %s167 = scalar_lea.vmem [#allocation0], 64
    %v168 = vld [vmem:[%s167] ss:$8 sm:$0xf]
    %s169 = scalar_lea.vmem [#allocation0], 64
    %v170 = vld [vmem:[%s169] ss:$8 sm:$0xf0]
    %vm171 = vcmask 1047556
    %v172 = vsel %vm171, %v170, %v168
    %vm173 = vcmask 203776
    %s174 = scalar_lea.vmem %s1, 8
    %175 = vst.msk [vmem:[%s174] sm:$0xff] %vm173, %v172
    %s176 = scalar_lea.vmem [#allocation0], 128
    %v177 = vld [vmem:[%s176] ss:$8 sm:$0xf]
    %s178 = scalar_lea.vmem [#allocation0], 128
    %v179 = vld [vmem:[%s178] ss:$8 sm:$0xf0]
    %vm180 = vcmask 1047556
    %v181 = vsel %vm180, %v179, %v177
    %vm182 = vcmask 203776
    %s183 = scalar_lea.vmem %s1, 16
    %184 = vst.msk [vmem:[%s183] sm:$0xff] %vm182, %v181
    %s185 = scalar_lea.vmem [#allocation0], 192
    %v186 = vld [vmem:[%s185] ss:$8 sm:$0xf]
    %s187 = scalar_lea.vmem [#allocation0], 192
    %v188 = vld [vmem:[%s187] ss:$8 sm:$0xf0]
    %vm189 = vcmask 1047556
    %v190 = vsel %vm189, %v188, %v186
    %vm191 = vcmask 203776
    %s192 = scalar_lea.vmem %s1, 24
    %193 = vst.msk [vmem:[%s192] sm:$0xff] %vm191, %v190
    %s194 = scalar_lea.vmem [#allocation0], 1
    %v195 = vld [vmem:[%s194] ss:$8 sm:$0xf]
    %s196 = scalar_lea.vmem [#allocation0], 1
    %v197 = vld [vmem:[%s196] ss:$8 sm:$0xf0]
    %vm198 = vcmask 1047556
    %v199 = vsel %vm198, %v197, %v195
    %200 = vrot.lane.b32.xlu0 %v199, 25
    %v201 = vpop.permute.xlu0 %200
    %vm202 = vcmask 408776
    %203 = vst.msk [vmem:[%s1] sm:$0xff] %vm202, %v201
    %s204 = scalar_lea.vmem [#allocation0], 65
    %v205 = vld [vmem:[%s204] ss:$8 sm:$0xf]
    %s206 = scalar_lea.vmem [#allocation0], 65
    %v207 = vld [vmem:[%s206] ss:$8 sm:$0xf0]
    %vm208 = vcmask 1047556
    %v209 = vsel %vm208, %v207, %v205
    %210 = vrot.lane.b32.xlu0 %v209, 25
    %v211 = vpop.permute.xlu0 %210
    %vm212 = vcmask 408776
    %s213 = scalar_lea.vmem %s1, 8
    %214 = vst.msk [vmem:[%s213] sm:$0xff] %vm212, %v211
    %s215 = scalar_lea.vmem [#allocation0], 129
    %v216 = vld [vmem:[%s215] ss:$8 sm:$0xf]
    %s217 = scalar_lea.vmem [#allocation0], 129
    %v218 = vld [vmem:[%s217] ss:$8 sm:$0xf0]
    %vm219 = vcmask 1047556
    %v220 = vsel %vm219, %v218, %v216
    %221 = vrot.lane.b32.xlu0 %v220, 25
    %v222 = vpop.permute.xlu0 %221
    %vm223 = vcmask 408776
    %s224 = scalar_lea.vmem %s1, 16
    %225 = vst.msk [vmem:[%s224] sm:$0xff] %vm223, %v222
    %s226 = scalar_lea.vmem [#allocation0], 193
    %v227 = vld [vmem:[%s226] ss:$8 sm:$0xf]
    %s228 = scalar_lea.vmem [#allocation0], 193
    %v229 = vld [vmem:[%s228] ss:$8 sm:$0xf0]
    %vm230 = vcmask 1047556
    %v231 = vsel %vm230, %v229, %v227
    %232 = vrot.lane.b32.xlu0 %v231, 25
    %v233 = vpop.permute.xlu0 %232
    %vm234 = vcmask 408776
    %s235 = scalar_lea.vmem %s1, 24
    %236 = vst.msk [vmem:[%s235] sm:$0xff] %vm234, %v233

// kernel: discriminator_forward.1
$region0: #{discriminator_forward.1}
  #allocation0 [shape = 'u32[]', space=smem, size = 0x4, offset = 0x4, fixed_abs, tag = 'smem constant byte address 0x4 - core index']
  #allocation1 [shape = 'u32[144,128]{1,0:T(1,128)}', space=vmem, size = 0x12000, scoped, tag = 'internal scratch']
  #allocation2 [shape = 'f32[1,1]{1,0:T(1,128)S(1)}', space=vmem, size = 0x200, scoped, tag = 'scoped memory for discriminator_forward.1']
  %s0 = inlined_call_operand.vmem [shape: bf16[338,16], index: 0, kind: input, shape index: {}]
  %s1 = inlined_call_operand.vmem [shape: bf16[50,256], index: 1, kind: input, shape index: {}]
  %s2 = inlined_call_operand.vmem [shape: bf16[16,16], index: 2, kind: input, shape index: {}]
  %s3 = inlined_call_operand.vmem [shape: bf16[256,256], index: 3, kind: input, shape index: {}]
  %s4 = inlined_call_operand.vmem [shape: f32[16,256], index: 4, kind: input, shape index: {}]
  %s5 = inlined_call_operand.vmem [shape: f32[1,16], index: 5, kind: input, shape index: {}]
  %s6 = inlined_call_operand.vmem [shape: f32[1,16], index: 6, kind: input, shape index: {}]
  %s7 = inlined_call_operand.vmem [shape: bf16[256,32], index: 7, kind: input, shape index: {}]
  %s8 = inlined_call_operand.vmem [shape: f32[1,32], index: 8, kind: input, shape index: {}]
  %s9 = inlined_call_operand.vmem [shape: f32[1,32], index: 9, kind: input, shape index: {}]
  %s10 = inlined_call_operand.vmem [shape: f32[50,32], index: 10, kind: input, shape index: {}]
  %s11 = inlined_call_operand.vmem [shape: f32[2,50], index: 11, kind: input, shape index: {}]
  %s12 = inlined_call_operand.<no memory space> [shape: f32[1,1], index: 12, kind: input, shape index: {}]
  %s13 = inlined_call_operand.vmem [shape: f32[2,1], index: 13, kind: output, shape index: {}]
  %s14 = sld [smem:[#allocation0]]
  $region62: #{discriminator_forward.1} parent=0
    _
  %s16 = ssub.s32 1, %s14
  %s17 = scalar_select 0, %s16, %s14
  %v18 = vstv %s12
  %19 = vst [vmem:[#allocation2] sm:$0x1] %v18
  // Predicated region
  $region2: #{discriminator_forward.1} parent=0 // pred_check
    _
  $region3: #{discriminator_forward.1} parent=0 // pred_check_branch
    %21 = sbr.rel (0) target = $region5
  $region4: #{discriminator_forward.1} parent=0 // pred_region
    _
  $region5: #{discriminator_forward.1} parent=0 // pred_fallthru
    _
  // Predicated region
  $region6: #{discriminator_forward.1} parent=0 // pred_check
    _
  $region7: #{discriminator_forward.1} parent=0 // pred_check_branch
    %23 = sbr.rel (0) target = $region9
  $region8: #{discriminator_forward.1} parent=0 // pred_region
    _
  $region9: #{discriminator_forward.1} parent=0 // pred_fallthru
    _
  // Predicated region
  $region10: #{discriminator_forward.1} parent=0 // pred_check
    _
  $region11: #{discriminator_forward.1} parent=0 // pred_check_branch
    %25 = sbr.rel (0) target = $region13
  $region12: #{discriminator_forward.1} parent=0 // pred_region
    _
  $region13: #{discriminator_forward.1} parent=0 // pred_fallthru
    _
  // Predicated region
  $region14: #{discriminator_forward.1} parent=0 // pred_check
    _
  $region15: #{discriminator_forward.1} parent=0 // pred_check_branch
    %27 = sbr.rel (0) target = $region17
  $region16: #{discriminator_forward.1} parent=0 // pred_region
    _
  $region17: #{discriminator_forward.1} parent=0 // pred_fallthru
    _
  // Predicated region
  $region18: #{discriminator_forward.1} parent=0 // pred_check
    _
  $region19: #{discriminator_forward.1} parent=0 // pred_check_branch
    %29 = sbr.rel (0) target = $region21
  $region20: #{discriminator_forward.1} parent=0 // pred_region
    _
  $region21: #{discriminator_forward.1} parent=0 // pred_fallthru
    _
  // Predicated region
  $region22: #{discriminator_forward.1} parent=0 // pred_check
    _
  $region23: #{discriminator_forward.1} parent=0 // pred_check_branch
    %31 = sbr.rel (0) target = $region25
  $region24: #{discriminator_forward.1} parent=0 // pred_region
    _
  $region25: #{discriminator_forward.1} parent=0 // pred_fallthru
    _
  // Predicated region
  $region26: #{discriminator_forward.1} parent=0 // pred_check
    _
  $region27: #{discriminator_forward.1} parent=0 // pred_check_branch
    %33 = sbr.rel (0) target = $region29
  $region28: #{discriminator_forward.1} parent=0 // pred_region
    _
  $region29: #{discriminator_forward.1} parent=0 // pred_fallthru
    _
  // Predicated region
  $region30: #{discriminator_forward.1} parent=0 // pred_check
    _
  $region31: #{discriminator_forward.1} parent=0 // pred_check_branch
    %35 = sbr.rel (0) target = $region33
  $region32: #{discriminator_forward.1} parent=0 // pred_region
    _
  $region33: #{discriminator_forward.1} parent=0 // pred_fallthru
    _
  // Predicated region
  $region34: #{discriminator_forward.1} parent=0 // pred_check
    _
  $region35: #{discriminator_forward.1} parent=0 // pred_check_branch
    %37 = sbr.rel (0) target = $region37
  $region36: #{discriminator_forward.1} parent=0 // pred_region
    _
  $region37: #{discriminator_forward.1} parent=0 // pred_fallthru
    _
  // Predicated region
  $region38: #{discriminator_forward.1} parent=0 // pred_check
    _
  $region39: #{discriminator_forward.1} parent=0 // pred_check_branch
    %39 = sbr.rel (0) target = $region41
  $region40: #{discriminator_forward.1} parent=0 // pred_region
    _
  $region41: #{discriminator_forward.1} parent=0 // pred_fallthru
    _
  // Predicated region
  $region42: #{discriminator_forward.1} parent=0 // pred_check
    _
  $region43: #{discriminator_forward.1} parent=0 // pred_check_branch
    %41 = sbr.rel (0) target = $region45
  $region44: #{discriminator_forward.1} parent=0 // pred_region
    _
  $region45: #{discriminator_forward.1} parent=0 // pred_fallthru
    _
  // Predicated region
  $region46: #{discriminator_forward.1} parent=0 // pred_check
    _
  $region47: #{discriminator_forward.1} parent=0 // pred_check_branch
    %43 = sbr.rel (0) target = $region49
  $region48: #{discriminator_forward.1} parent=0 // pred_region
    _
  $region49: #{discriminator_forward.1} parent=0 // pred_fallthru
    _
  // Predicated region
  $region50: #{discriminator_forward.1} parent=0 // pred_check
    _
  $region51: #{discriminator_forward.1} parent=0 // pred_check_branch
    %45 = sbr.rel (0) target = $region53
  $region52: #{discriminator_forward.1} parent=0 // pred_region
    _
  $region53: #{discriminator_forward.1} parent=0 // pred_fallthru
    _
  %v47 = vld [vmem:[%s0] sm:$0xf]
  %v48 = vld [vmem:[%s0 + $0x4] sm:$0xf]
  %v49 = vld [vmem:[%s0 + $0x8] sm:$0xf]
  %v50 = vld [vmem:[%s0 + $0xc] sm:$0xf]
  %v51 = vld [vmem:[%s0 + $0x10] sm:$0xf]
  %v52 = vld [vmem:[%s0 + $0x14] sm:$0xf]
  %v53 = vld [vmem:[%s0 + $0x18] sm:$0xf]
  %v54 = vld [vmem:[%s0 + $0x1c] sm:$0xf]
  %v55 = vld [vmem:[%s0 + $0x20] sm:$0xf]
  %v56 = vld [vmem:[%s0 + $0x24] sm:$0xf]
  %v57 = vld [vmem:[%s0 + $0x28] sm:$0xf]
  %v58 = vld [vmem:[%s0 + $0x2c] sm:$0xf]
  %v59 = vld [vmem:[%s0 + $0x30] sm:$0xf]
  %v60 = vld [vmem:[%s0 + $0x34] sm:$0xf]
  %v61 = vld [vmem:[%s0 + $0x38] sm:$0xf]
  %v62 = vld [vmem:[%s0 + $0x3c] sm:$0xf]
  %v63 = vld [vmem:[%s0 + $0x40] sm:$0xf]
  %v64 = vld [vmem:[%s0 + $0x44] sm:$0xf]
  %v65 = vld [vmem:[%s0 + $0x48] sm:$0xf]
  %v66 = vld [vmem:[%s0 + $0x4c] sm:$0xf]
  %v67 = vld [vmem:[%s0 + $0x50] sm:$0xf]
  %v68 = vld [vmem:[%s0 + $0x54] sm:$0xf]
  %v69 = vld [vmem:[%s0 + $0x58] sm:$0xf]
  %v70 = vld [vmem:[%s0 + $0x5c] sm:$0xf]
  %v71 = vld [vmem:[%s0 + $0x60] sm:$0xf]
  %v72 = vld [vmem:[%s0 + $0x64] sm:$0xf]
  %v73 = vld [vmem:[%s0 + $0x68] sm:$0xf]
  %v74 = vld [vmem:[%s0 + $0x6c] sm:$0xf]
  %v75 = vld [vmem:[%s0 + $0x70] sm:$0xf]
  %v76 = vld [vmem:[%s0 + $0x74] sm:$0xf]
  %v77 = vld [vmem:[%s0 + $0x78] sm:$0xf]
  %v78 = vld [vmem:[%s0 + $0x7c] sm:$0xf]
  %v79 = vld [vmem:[%s0 + $0x80] sm:$0xf]
  %v80 = vld [vmem:[%s0 + $0x84] sm:$0xf]
  %v81 = vld [vmem:[%s0 + $0x88] sm:$0xf]
  %v82 = vld [vmem:[%s0 + $0x8c] sm:$0xf]
  %v83 = vld [vmem:[%s0 + $0x90] sm:$0xf]
  %v84 = vld [vmem:[%s0 + $0x94] sm:$0xf]
  %v85 = vld [vmem:[%s0 + $0x98] sm:$0xf]
  %v86 = vld [vmem:[%s0 + $0x9c] sm:$0xf]
  %v87 = vld [vmem:[%s0 + $0xa0] sm:$0xf]
  %v88 = vld [vmem:[%s0 + $0xa4] sm:$0xf]
  %v89 = vld [vmem:[%s0 + $0xa8] sm:$0x1]
  %v90 = vld [vmem:[%s2] sm:$0xf]
  %v91 = vld [vmem:[%s2 + $0x4] sm:$0xf]
  %v135 = vunpack.c.l.b16 %v47
  %v136 = vunpack.c.l.b16 %v48
  %v137 = vunpack.c.l.b16 %v49
  %v138 = vunpack.c.l.b16 %v50
  %v139 = vunpack.c.l.b16 %v51
  %v140 = vunpack.c.l.b16 %v52
  %v141 = vunpack.c.l.b16 %v53
  %v142 = vunpack.c.l.b16 %v54
  %v143 = vunpack.c.l.b16 %v55
  %v144 = vunpack.c.l.b16 %v56
  %v145 = vunpack.c.l.b16 %v57
  %v146 = vunpack.c.l.b16 %v58
  %v147 = vunpack.c.l.b16 %v59
  %v148 = vunpack.c.l.b16 %v60
  %v149 = vunpack.c.l.b16 %v61
  %v150 = vunpack.c.l.b16 %v62
  %v151 = vunpack.c.l.b16 %v63
  %v152 = vunpack.c.l.b16 %v64
  %v153 = vunpack.c.l.b16 %v65
  %v154 = vunpack.c.l.b16 %v66
  %v155 = vunpack.c.l.b16 %v67
  %v156 = vunpack.c.l.b16 %v68
  %v157 = vunpack.c.l.b16 %v69
  %v158 = vunpack.c.l.b16 %v70
  %v159 = vunpack.c.l.b16 %v71
  %v160 = vunpack.c.l.b16 %v72
  %v161 = vunpack.c.l.b16 %v73
  %v162 = vunpack.c.l.b16 %v74
  %v163 = vunpack.c.l.b16 %v75
  %v164 = vunpack.c.l.b16 %v76
  %v165 = vunpack.c.l.b16 %v77
  %v166 = vunpack.c.l.b16 %v78
  %v167 = vunpack.c.l.b16 %v79
  %v168 = vunpack.c.l.b16 %v80
  %v169 = vunpack.c.l.b16 %v81
  %v170 = vunpack.c.l.b16 %v82
  %v171 = vunpack.c.l.b16 %v83
  %v172 = vunpack.c.l.b16 %v84
  %v173 = vunpack.c.l.b16 %v85
  %v174 = vunpack.c.l.b16 %v86
  %v175 = vunpack.c.l.b16 %v87
  %v176 = vunpack.c.l.b16 %v88
  %v177 = vunpack.c.l.b16 %v89
  %v178 = vpack.c.b16 %v136, %v135
  %v179 = vpack.c.b16 %v138, %v137
  %v180 = vpack.c.b16 %v140, %v139
  %v181 = vpack.c.b16 %v142, %v141
  %v182 = vpack.c.b16 %v144, %v143
  %v183 = vpack.c.b16 %v146, %v145
  %v184 = vpack.c.b16 %v148, %v147
  %v185 = vpack.c.b16 %v150, %v149
  %v186 = vpack.c.b16 %v152, %v151
  %v187 = vpack.c.b16 %v154, %v153
  %v188 = vpack.c.b16 %v156, %v155
  %v189 = vpack.c.b16 %v158, %v157
  %v190 = vpack.c.b16 %v160, %v159
  %v191 = vpack.c.b16 %v162, %v161
  %v192 = vpack.c.b16 %v164, %v163
  %v193 = vpack.c.b16 %v166, %v165
  %v194 = vpack.c.b16 %v168, %v167
  %v195 = vpack.c.b16 %v170, %v169
  %v196 = vpack.c.b16 %v172, %v171
  %v197 = vpack.c.b16 %v174, %v173
  %v198 = vpack.c.b16 %v176, %v175
  %v199 = vpack.c.b16 %v177, %v177
  %v202 = vunpack.c.l.b16 %v90
  %v203 = vunpack.c.l.b16 %v91
  %v204 = vpack.c.b16 %v203, %v202
  %vm206 = vcmask 130048
  %v208 = vsel %vm206, %v178, 0
  %v211 = vsel %vm206, %v179, 0
  %v214 = vsel %vm206, %v180, 0
  %v217 = vsel %vm206, %v181, 0
  %v220 = vsel %vm206, %v182, 0
  %v223 = vsel %vm206, %v183, 0
  %v226 = vsel %vm206, %v184, 0
  %v229 = vsel %vm206, %v185, 0
  %v232 = vsel %vm206, %v186, 0
  %v235 = vsel %vm206, %v187, 0
  %v238 = vsel %vm206, %v188, 0
  %v241 = vsel %vm206, %v189, 0
  %v244 = vsel %vm206, %v190, 0
  %v247 = vsel %vm206, %v191, 0
  %v250 = vsel %vm206, %v192, 0
  %v253 = vsel %vm206, %v193, 0
  %v256 = vsel %vm206, %v194, 0
  %v259 = vsel %vm206, %v195, 0
  %v262 = vsel %vm206, %v196, 0
  %v265 = vsel %vm206, %v197, 0
  %v268 = vsel %vm206, %v198, 0
  %v271 = vsel %vm206, %v199, 0
  %273 = vmatprep.subr.bf16.mxu0 0
  %274 = vmatpush1.bf16.msra.mxu0 0
  %275 = vmatprep.subr.bf16.mxu0 0
  %276 = vmatpush1.bf16.msra.mxu0 0
  %277 = vmatprep.subr.bf16.mxu0 0
  %278 = vmatpush1.bf16.msra.mxu0 0
  %279 = vmatprep.subr.bf16.mxu0 0
  %280 = vmatpush1.bf16.msra.mxu0 0
  %281 = vmatprep.subr.bf16.mxu0 0
  %282 = vmatpush1.bf16.msra.mxu0 0
  %283 = vmatprep.subr.bf16.mxu0 0
  %284 = vmatpush1.bf16.msra.mxu0 0
  %285 = vmatprep.subr.bf16.mxu0 0
  %286 = vmatpush1.bf16.msra.mxu0 0
  %287 = vmatprep.subr.bf16.mxu0 0
  %288 = vmatpush1.bf16.msra.mxu0 %v204
  %289 = vmatprep.subr.bf16.mxu0 0
  %290 = vmatpush2.bf16.msra.mxu0 0
  %291 = vmatprep.subr.bf16.mxu0 0
  %292 = vmatpush2.bf16.msra.mxu0 0
  %293 = vmatprep.subr.bf16.mxu0 0
  %294 = vmatpush2.bf16.msra.mxu0 0
  %295 = vmatprep.subr.bf16.mxu0 0
  %296 = vmatpush2.bf16.msra.mxu0 0
  %297 = vmatprep.subr.bf16.mxu0 0
  %298 = vmatpush2.bf16.msra.mxu0 0
  %299 = vmatprep.subr.bf16.mxu0 0
  %300 = vmatpush2.bf16.msra.mxu0 0
  %301 = vmatprep.subr.bf16.mxu0 0
  %302 = vmatpush2.bf16.msra.mxu0 0
  %303 = vmatprep.subr.bf16.mxu0 0
  %304 = vmatpush2.bf16.msra.mxu0 0
  %305 = vmatprep.mubr.bf16.mxu0 0
  %306 = vmatmul.mubr.bf16.gmra.mxu0 %v208
  %v307 = vpop.f32.mrf.mxu0
  %v308 = vadd.f32 0.0, %v307
  %v309 = vpop.f32.mrf.mxu0
  %v310 = vpop.f32.mrf.mxu0
  %v311 = vadd.f32 0.0, %v310
  %v312 = vpop.f32.mrf.mxu0
  %313 = vmatprep.mubr.bf16.mxu0 0
  %314 = vmatmul.mubr.bf16.gmra.mxu0 %v211
  %v315 = vpop.f32.mrf.mxu0
  %v316 = vadd.f32 0.0, %v315
  %v317 = vpop.f32.mrf.mxu0
  %v318 = vpop.f32.mrf.mxu0
  %v319 = vadd.f32 0.0, %v318
  %v320 = vpop.f32.mrf.mxu0
  %321 = vmatprep.mubr.bf16.mxu0 0
  %322 = vmatmul.mubr.bf16.gmra.mxu0 %v214
  %v323 = vpop.f32.mrf.mxu0
  %v324 = vadd.f32 0.0, %v323
  %v325 = vpop.f32.mrf.mxu0
  %v326 = vpop.f32.mrf.mxu0
  %v327 = vadd.f32 0.0, %v326
  %v328 = vpop.f32.mrf.mxu0
  %329 = vmatprep.mubr.bf16.mxu0 0
  %330 = vmatmul.mubr.bf16.gmra.mxu0 %v217
  %v331 = vpop.f32.mrf.mxu0
  %v332 = vadd.f32 0.0, %v331
  %v333 = vpop.f32.mrf.mxu0
  %v334 = vpop.f32.mrf.mxu0
  %v335 = vadd.f32 0.0, %v334
  %v336 = vpop.f32.mrf.mxu0
  %337 = vmatprep.mubr.bf16.mxu0 0
  %338 = vmatmul.mubr.bf16.gmra.mxu0 %v220
  %v339 = vpop.f32.mrf.mxu0
  %v340 = vadd.f32 0.0, %v339
  %v341 = vpop.f32.mrf.mxu0
  %v342 = vpop.f32.mrf.mxu0
  %v343 = vadd.f32 0.0, %v342
  %v344 = vpop.f32.mrf.mxu0
  %345 = vmatprep.mubr.bf16.mxu0 0
  %346 = vmatmul.mubr.bf16.gmra.mxu0 %v223
  %v347 = vpop.f32.mrf.mxu0
  %v348 = vadd.f32 0.0, %v347
  %v349 = vpop.f32.mrf.mxu0
  %v350 = vpop.f32.mrf.mxu0
  %v351 = vadd.f32 0.0, %v350
  %v352 = vpop.f32.mrf.mxu0
  %353 = vmatprep.mubr.bf16.mxu0 0
  %354 = vmatmul.mubr.bf16.gmra.mxu0 %v226
  %v355 = vpop.f32.mrf.mxu0
  %v356 = vadd.f32 0.0, %v355
  %v357 = vpop.f32.mrf.mxu0
  %v358 = vpop.f32.mrf.mxu0
  %v359 = vadd.f32 0.0, %v358
  %v360 = vpop.f32.mrf.mxu0
  %361 = vmatprep.mubr.bf16.mxu0 0
  %362 = vmatmul.mubr.bf16.gmra.mxu0 %v229
  %v363 = vpop.f32.mrf.mxu0
  %v364 = vadd.f32 0.0, %v363
  %v365 = vpop.f32.mrf.mxu0
  %v366 = vpop.f32.mrf.mxu0
  %v367 = vadd.f32 0.0, %v366
  %v368 = vpop.f32.mrf.mxu0
  %369 = vmatprep.mubr.bf16.mxu0 0
  %370 = vmatmul.mubr.bf16.gmra.mxu0 %v232
  %v371 = vpop.f32.mrf.mxu0
  %v372 = vadd.f32 0.0, %v371
  %v373 = vpop.f32.mrf.mxu0
  %v374 = vpop.f32.mrf.mxu0
  %v375 = vadd.f32 0.0, %v374
  %v376 = vpop.f32.mrf.mxu0
  %377 = vmatprep.mubr.bf16.mxu0 0
  %378 = vmatmul.mubr.bf16.gmra.mxu0 %v235
  %v379 = vpop.f32.mrf.mxu0
  %v380 = vadd.f32 0.0, %v379
  %v381 = vpop.f32.mrf.mxu0
  %v382 = vpop.f32.mrf.mxu0
  %v383 = vadd.f32 0.0, %v382
  %v384 = vpop.f32.mrf.mxu0
  %385 = vmatprep.mubr.bf16.mxu0 0
  %386 = vmatmul.mubr.bf16.gmra.mxu0 %v238
  %v387 = vpop.f32.mrf.mxu0
  %v388 = vadd.f32 0.0, %v387
  %v389 = vpop.f32.mrf.mxu0
  %v390 = vpop.f32.mrf.mxu0
  %v391 = vadd.f32 0.0, %v390
  %v392 = vpop.f32.mrf.mxu0
  %393 = vmatprep.mubr.bf16.mxu0 0
  %394 = vmatmul.mubr.bf16.gmra.mxu0 %v241
  %v395 = vpop.f32.mrf.mxu0
  %v396 = vadd.f32 0.0, %v395
  %v397 = vpop.f32.mrf.mxu0
  %v398 = vpop.f32.mrf.mxu0
  %v399 = vadd.f32 0.0, %v398
  %v400 = vpop.f32.mrf.mxu0
  %401 = vmatprep.mubr.bf16.mxu0 0
  %402 = vmatmul.mubr.bf16.gmra.mxu0 %v244
  %v403 = vpop.f32.mrf.mxu0
  %v404 = vadd.f32 0.0, %v403
  %v405 = vpop.f32.mrf.mxu0
  %v406 = vpop.f32.mrf.mxu0
  %v407 = vadd.f32 0.0, %v406
  %v408 = vpop.f32.mrf.mxu0
  %409 = vmatprep.mubr.bf16.mxu0 0
  %410 = vmatmul.mubr.bf16.gmra.mxu0 %v247
  %v411 = vpop.f32.mrf.mxu0
  %v412 = vadd.f32 0.0, %v411
  %v413 = vpop.f32.mrf.mxu0
  %v414 = vpop.f32.mrf.mxu0
  %v415 = vadd.f32 0.0, %v414
  %v416 = vpop.f32.mrf.mxu0
  %417 = vmatprep.mubr.bf16.mxu0 0
  %418 = vmatmul.mubr.bf16.gmra.mxu0 %v250
  %v419 = vpop.f32.mrf.mxu0
  %v420 = vadd.f32 0.0, %v419
  %v421 = vpop.f32.mrf.mxu0
  %v422 = vpop.f32.mrf.mxu0
  %v423 = vadd.f32 0.0, %v422
  %v424 = vpop.f32.mrf.mxu0
  %425 = vmatprep.mubr.bf16.mxu0 0
  %426 = vmatmul.mubr.bf16.gmra.mxu0 %v253
  %v427 = vpop.f32.mrf.mxu0
  %v428 = vadd.f32 0.0, %v427
  %v429 = vpop.f32.mrf.mxu0
  %v430 = vpop.f32.mrf.mxu0
  %v431 = vadd.f32 0.0, %v430
  %v432 = vpop.f32.mrf.mxu0
  %433 = vmatprep.mubr.bf16.mxu0 0
  %434 = vmatmul.mubr.bf16.gmra.mxu0 %v256
  %v435 = vpop.f32.mrf.mxu0
  %v436 = vadd.f32 0.0, %v435
  %v437 = vpop.f32.mrf.mxu0
  %v438 = vpop.f32.mrf.mxu0
  %v439 = vadd.f32 0.0, %v438
  %v440 = vpop.f32.mrf.mxu0
  %441 = vmatprep.mubr.bf16.mxu0 0
  %442 = vmatmul.mubr.bf16.gmra.mxu0 %v259
  %v443 = vpop.f32.mrf.mxu0
  %v444 = vadd.f32 0.0, %v443
  %v445 = vpop.f32.mrf.mxu0
  %v446 = vpop.f32.mrf.mxu0
  %v447 = vadd.f32 0.0, %v446
  %v448 = vpop.f32.mrf.mxu0
  %449 = vmatprep.mubr.bf16.mxu0 0
  %450 = vmatmul.mubr.bf16.gmra.mxu0 %v262
  %v451 = vpop.f32.mrf.mxu0
  %v452 = vadd.f32 0.0, %v451
  %v453 = vpop.f32.mrf.mxu0
  %v454 = vpop.f32.mrf.mxu0
  %v455 = vadd.f32 0.0, %v454
  %v456 = vpop.f32.mrf.mxu0
  %457 = vmatprep.mubr.bf16.mxu0 0
  %458 = vmatmul.mubr.bf16.gmra.mxu0 %v265
  %v459 = vpop.f32.mrf.mxu0
  %v460 = vadd.f32 0.0, %v459
  %v461 = vpop.f32.mrf.mxu0
  %v462 = vpop.f32.mrf.mxu0
  %v463 = vadd.f32 0.0, %v462
  %v464 = vpop.f32.mrf.mxu0
  %465 = vmatprep.mubr.bf16.mxu0 0
  %466 = vmatmul.mubr.bf16.gmra.mxu0 %v268
  %v467 = vpop.f32.mrf.mxu0
  %v468 = vadd.f32 0.0, %v467
  %v469 = vpop.f32.mrf.mxu0
  %v470 = vpop.f32.mrf.mxu0
  %v471 = vadd.f32 0.0, %v470
  %v472 = vpop.f32.mrf.mxu0
  %473 = vmatprep.mubr.bf16.mxu0 0
  %474 = vmatmul.mubr.bf16.gmra.mxu0 %v271
  %v475 = vpop.f32.mrf.mxu0
  %v476 = vadd.f32 0.0, %v475
  %v477 = vpop.f32.mrf.mxu0
  %v478 = vpop.f32.mrf.mxu0
  %v479 = vpop.f32.mrf.mxu0
  %480 = vdwg.mxu0
  %v481 = vsel %vm206, %v308, 0.0
  %v482 = vsel %vm206, %v311, 0.0
  %v483 = vadd.f32 %v481, %v482
  %v484 = vsel %vm206, %v316, 0.0
  %v485 = vadd.f32 %v483, %v484
  %v486 = vsel %vm206, %v319, 0.0
  %v487 = vadd.f32 %v485, %v486
  %v488 = vsel %vm206, %v324, 0.0
  %v489 = vadd.f32 %v487, %v488
  %v490 = vsel %vm206, %v327, 0.0
  %v491 = vadd.f32 %v489, %v490
  %v492 = vsel %vm206, %v332, 0.0
  %v493 = vadd.f32 %v491, %v492
  %v494 = vsel %vm206, %v335, 0.0
  %v495 = vadd.f32 %v493, %v494
  %v496 = vsel %vm206, %v340, 0.0
  %v497 = vadd.f32 %v495, %v496
  %v498 = vsel %vm206, %v343, 0.0
  %v499 = vadd.f32 %v497, %v498
  %v500 = vsel %vm206, %v348, 0.0
  %v501 = vadd.f32 %v499, %v500
  %v502 = vsel %vm206, %v351, 0.0
  %v503 = vadd.f32 %v501, %v502
  %v504 = vsel %vm206, %v356, 0.0
  %v505 = vadd.f32 %v503, %v504
  %v506 = vsel %vm206, %v359, 0.0
  %v507 = vadd.f32 %v505, %v506
  %v508 = vsel %vm206, %v364, 0.0
  %v509 = vadd.f32 %v507, %v508
  %v510 = vsel %vm206, %v367, 0.0
  %v511 = vadd.f32 %v509, %v510
  %v512 = vsel %vm206, %v372, 0.0
  %v513 = vadd.f32 %v511, %v512
  %v514 = vsel %vm206, %v375, 0.0
  %v515 = vadd.f32 %v513, %v514
  %v516 = vsel %vm206, %v380, 0.0
  %v517 = vadd.f32 %v515, %v516
  %v518 = vsel %vm206, %v383, 0.0
  %v519 = vadd.f32 %v517, %v518
  %v520 = vsel %vm206, %v388, 0.0
  %v521 = vadd.f32 %v519, %v520
  %v522 = vsel %vm206, %v391, 0.0
  %v523 = vadd.f32 %v521, %v522
  %v524 = vsel %vm206, %v396, 0.0
  %v525 = vadd.f32 %v523, %v524
  %v526 = vsel %vm206, %v399, 0.0
  %v527 = vadd.f32 %v525, %v526
  %v528 = vsel %vm206, %v404, 0.0
  %v529 = vadd.f32 %v527, %v528
  %v530 = vsel %vm206, %v407, 0.0
  %v531 = vadd.f32 %v529, %v530
  %v532 = vsel %vm206, %v412, 0.0
  %v533 = vadd.f32 %v531, %v532
  %v534 = vsel %vm206, %v415, 0.0
  %v535 = vadd.f32 %v533, %v534
  %v536 = vsel %vm206, %v420, 0.0
  %v537 = vadd.f32 %v535, %v536
  %v538 = vsel %vm206, %v423, 0.0
  %v539 = vadd.f32 %v537, %v538
  %v540 = vsel %vm206, %v428, 0.0
  %v541 = vadd.f32 %v539, %v540
  %v542 = vsel %vm206, %v431, 0.0
  %v543 = vadd.f32 %v541, %v542
  %v544 = vsel %vm206, %v436, 0.0
  %v545 = vadd.f32 %v543, %v544
  %v546 = vsel %vm206, %v439, 0.0
  %v547 = vadd.f32 %v545, %v546
  %v548 = vsel %vm206, %v444, 0.0
  %v549 = vadd.f32 %v547, %v548
  %v550 = vsel %vm206, %v447, 0.0
  %v551 = vadd.f32 %v549, %v550
  %v552 = vsel %vm206, %v452, 0.0
  %v553 = vadd.f32 %v551, %v552
  %v554 = vsel %vm206, %v455, 0.0
  %v555 = vadd.f32 %v553, %v554
  %v556 = vsel %vm206, %v460, 0.0
  %v557 = vadd.f32 %v555, %v556
  %v558 = vsel %vm206, %v463, 0.0
  %v559 = vadd.f32 %v557, %v558
  %v560 = vsel %vm206, %v468, 0.0
  %v561 = vadd.f32 %v559, %v560
  %v562 = vsel %vm206, %v471, 0.0
  %v563 = vadd.f32 %v561, %v562
  %vm564 = vcmask 123904
  %v565 = vsel %vm564, %v476, 0.0
  %v566 = vadd.f32 %v563, %v565
  %v567 = vrot.slane %v566, 4
  %v568 = vadd.f32 %v566, %v567
  %v569 = vrot.slane %v568, 2
  %v570 = vadd.f32 %v568, %v569
  %v571 = vrot.slane %v570, 1
  %v572 = vadd.f32 %v570, %v571
  %v573 = vmul.f32 %v572, 0.00295858
  %v574 = vmul.f32 %v308, %v308
  %v575 = vmul.f32 %v311, %v311
  %v576 = vmul.f32 %v316, %v316
  %v577 = vmul.f32 %v319, %v319
  %v578 = vmul.f32 %v324, %v324
  %v579 = vmul.f32 %v327, %v327
  %v580 = vmul.f32 %v332, %v332
  %v581 = vmul.f32 %v335, %v335
  %v582 = vmul.f32 %v340, %v340
  %v583 = vmul.f32 %v343, %v343
  %v584 = vmul.f32 %v348, %v348
  %v585 = vmul.f32 %v351, %v351
  %v586 = vmul.f32 %v356, %v356
  %v587 = vmul.f32 %v359, %v359
  %v588 = vmul.f32 %v364, %v364
  %v589 = vmul.f32 %v367, %v367
  %v590 = vmul.f32 %v372, %v372
  %v591 = vmul.f32 %v375, %v375
  %v592 = vmul.f32 %v380, %v380
  %v593 = vmul.f32 %v383, %v383
  %v594 = vmul.f32 %v388, %v388
  %v595 = vmul.f32 %v391, %v391
  %v596 = vmul.f32 %v396, %v396
  %v597 = vmul.f32 %v399, %v399
  %v598 = vmul.f32 %v404, %v404
  %v599 = vmul.f32 %v407, %v407
  %v600 = vmul.f32 %v412, %v412
  %v601 = vmul.f32 %v415, %v415
  %v602 = vmul.f32 %v420, %v420
  %v603 = vmul.f32 %v423, %v423
  %v604 = vmul.f32 %v428, %v428
  %v605 = vmul.f32 %v431, %v431
  %v606 = vmul.f32 %v436, %v436
  %v607 = vmul.f32 %v439, %v439
  %v608 = vmul.f32 %v444, %v444
  %v609 = vmul.f32 %v447, %v447
  %v610 = vmul.f32 %v452, %v452
  %v611 = vmul.f32 %v455, %v455
  %v612 = vmul.f32 %v460, %v460
  %v613 = vmul.f32 %v463, %v463
  %v614 = vmul.f32 %v468, %v468
  %v615 = vmul.f32 %v471, %v471
  %v616 = vmul.f32 %v476, %v476
  %v617 = vsel %vm206, %v574, 0.0
  %v618 = vsel %vm206, %v575, 0.0
  %v619 = vadd.f32 %v617, %v618
  %v620 = vsel %vm206, %v576, 0.0
  %v621 = vadd.f32 %v619, %v620
  %v622 = vsel %vm206, %v577, 0.0
  %v623 = vadd.f32 %v621, %v622
  %v624 = vsel %vm206, %v578, 0.0
  %v625 = vadd.f32 %v623, %v624
  %v626 = vsel %vm206, %v579, 0.0
  %v627 = vadd.f32 %v625, %v626
  %v628 = vsel %vm206, %v580, 0.0
  %v629 = vadd.f32 %v627, %v628
  %v630 = vsel %vm206, %v581, 0.0
  %v631 = vadd.f32 %v629, %v630
  %v632 = vsel %vm206, %v582, 0.0
  %v633 = vadd.f32 %v631, %v632
  %v634 = vsel %vm206, %v583, 0.0
  %v635 = vadd.f32 %v633, %v634
  %v636 = vsel %vm206, %v584, 0.0
  %v637 = vadd.f32 %v635, %v636
  %v638 = vsel %vm206, %v585, 0.0
  %v639 = vadd.f32 %v637, %v638
  %v640 = vsel %vm206, %v586, 0.0
  %v641 = vadd.f32 %v639, %v640
  %v642 = vsel %vm206, %v587, 0.0
  %v643 = vadd.f32 %v641, %v642
  %v644 = vsel %vm206, %v588, 0.0
  %v645 = vadd.f32 %v643, %v644
  %v646 = vsel %vm206, %v589, 0.0
  %v647 = vadd.f32 %v645, %v646
  %v648 = vsel %vm206, %v590, 0.0
  %v649 = vadd.f32 %v647, %v648
  %v650 = vsel %vm206, %v591, 0.0
  %v651 = vadd.f32 %v649, %v650
  %v652 = vsel %vm206, %v592, 0.0
  %v653 = vadd.f32 %v651, %v652
  %v654 = vsel %vm206, %v593, 0.0
  %v655 = vadd.f32 %v653, %v654
  %v656 = vsel %vm206, %v594, 0.0
  %v657 = vadd.f32 %v655, %v656
  %v658 = vsel %vm206, %v595, 0.0
  %v659 = vadd.f32 %v657, %v658
  %v660 = vsel %vm206, %v596, 0.0
  %v661 = vadd.f32 %v659, %v660
  %v662 = vsel %vm206, %v597, 0.0
  %v663 = vadd.f32 %v661, %v662
  %v664 = vsel %vm206, %v598, 0.0
  %v665 = vadd.f32 %v663, %v664
  %v666 = vsel %vm206, %v599, 0.0
  %v667 = vadd.f32 %v665, %v666
  %v668 = vsel %vm206, %v600, 0.0
  %v669 = vadd.f32 %v667, %v668
  %v670 = vsel %vm206, %v601, 0.0
  %v671 = vadd.f32 %v669, %v670
  %v672 = vsel %vm206, %v602, 0.0
  %v673 = vadd.f32 %v671, %v672
  %v674 = vsel %vm206, %v603, 0.0
  %v675 = vadd.f32 %v673, %v674
  %v676 = vsel %vm206, %v604, 0.0
  %v677 = vadd.f32 %v675, %v676
  %v678 = vsel %vm206, %v605, 0.0
  %v679 = vadd.f32 %v677, %v678
  %v680 = vsel %vm206, %v606, 0.0
  %v681 = vadd.f32 %v679, %v680
  %v682 = vsel %vm206, %v607, 0.0
  %v683 = vadd.f32 %v681, %v682
  %v684 = vsel %vm206, %v608, 0.0
  %v685 = vadd.f32 %v683, %v684
  %v686 = vsel %vm206, %v609, 0.0
  %v687 = vadd.f32 %v685, %v686
  %v688 = vsel %vm206, %v610, 0.0
  %v689 = vadd.f32 %v687, %v688
  %v690 = vsel %vm206, %v611, 0.0
  %v691 = vadd.f32 %v689, %v690
  %v692 = vsel %vm206, %v612, 0.0
  %v693 = vadd.f32 %v691, %v692
  %v694 = vsel %vm206, %v613, 0.0
  %v695 = vadd.f32 %v693, %v694
  %v696 = vsel %vm206, %v614, 0.0
  %v697 = vadd.f32 %v695, %v696
  %v698 = vsel %vm206, %v615, 0.0
  %v699 = vadd.f32 %v697, %v698
  %v700 = vsel %vm564, %v616, 0.0
  %v701 = vadd.f32 %v699, %v700
  %v702 = vrot.slane %v701, 4
  %v703 = vadd.f32 %v701, %v702
  %v704 = vrot.slane %v703, 2
  %v705 = vadd.f32 %v703, %v704
  %v706 = vrot.slane %v705, 1
  %v707 = vadd.f32 %v705, %v706
  %v708 = vmul.f32 %v707, 0.00295858
  %v709 = vmul.f32 %v573, %v573
  %v710 = vsub.f32 %v708, %v709
  %v711 = vld [vmem:[%s5] sm:$0x1]
  %v712 = vadd.f32 %v710, 1e-05
  %v713 = vrsqrt.pop %v712
  %v714 = vmul.f32 %v711, %v713
  %v715 = vld [vmem:[%s6] sm:$0x1]
  %v716 = vmul.f32 %v573, %v714
  %v717 = vsub.f32 %v715, %v716
  %v718 = vld [vmem:[%s4] sm:$0xff]
  %v719 = vld [vmem:[%s4 + $0x8] sm:$0xff]
  %v720 = vld [vmem:[%s4 + $0x10] sm:$0xff]
  %v721 = vld [vmem:[%s4 + $0x18] sm:$0xff]
  %v723 = vsel %vm206, %v714, 0
  %725 = vmatprep.subr.mxu0 0.0
  %726 = vmatpush1.msra.mxu0 0.0
  %727 = vmatprep.subr.mxu0 0.0
  %728 = vmatpush1.msra.mxu0 0.0
  %729 = vmatprep.subr.mxu0 0.0
  %730 = vmatpush1.msra.mxu0 0.0
  %731 = vmatprep.subr.mxu0 0.0
  %732 = vmatpush1.msra.mxu0 0.0
  %733 = vmatprep.subr.mxu0 0.0
  %734 = vmatpush1.msra.mxu0 0.0
  %735 = vmatprep.subr.mxu0 0.0
  %736 = vmatpush1.msra.mxu0 0.0
  %737 = vmatprep.subr.mxu0 0.0
  %738 = vmatpush1.msra.mxu0 0.0
  %739 = vmatprep.subr.mxu0 0.0
  %740 = vmatpush1.msra.mxu0 0.0
  %741 = vmatprep.subr.mxu0 0.0
  %742 = vmatpush1.msra.mxu0 0.0
  %743 = vmatprep.subr.mxu0 0.0
  %744 = vmatpush1.msra.mxu0 0.0
  %745 = vmatprep.subr.mxu0 0.0
  %746 = vmatpush1.msra.mxu0 0.0
  %747 = vmatprep.subr.mxu0 0.0
  %748 = vmatpush1.msra.mxu0 0.0
  %749 = vmatprep.subr.mxu0 0.0
  %750 = vmatpush1.msra.mxu0 0.0
  %751 = vmatprep.subr.mxu0 0.0
  %752 = vmatpush1.msra.mxu0 0.0
  %753 = vmatprep.subr.mxu0 %v721
  %754 = vmatpush1.msra.mxu0 %v720
  %755 = vmatprep.subr.mxu0 %v719
  %756 = vmatpush1.msra.mxu0 %v718
  %757 = vmatprep.subr.mxu0 0.0
  %758 = vmatpush2.msra.mxu0 0.0
  %759 = vmatprep.subr.mxu0 0.0
  %760 = vmatpush2.msra.mxu0 0.0
  %761 = vmatprep.subr.mxu0 0.0
  %762 = vmatpush2.msra.mxu0 0.0
  %763 = vmatprep.subr.mxu0 0.0
  %764 = vmatpush2.msra.mxu0 0.0
  %765 = vmatprep.subr.mxu0 0.0
  %766 = vmatpush2.msra.mxu0 0.0
  %767 = vmatprep.subr.mxu0 0.0
  %768 = vmatpush2.msra.mxu0 0.0
  %769 = vmatprep.subr.mxu0 0.0
  %770 = vmatpush2.msra.mxu0 0.0
  %771 = vmatprep.subr.mxu0 0.0
  %772 = vmatpush2.msra.mxu0 0.0
  %773 = vmatprep.subr.mxu0 0.0
  %774 = vmatpush2.msra.mxu0 0.0
  %775 = vmatprep.subr.mxu0 0.0
  %776 = vmatpush2.msra.mxu0 0.0
  %777 = vmatprep.subr.mxu0 0.0
  %778 = vmatpush2.msra.mxu0 0.0
  %779 = vmatprep.subr.mxu0 0.0
  %780 = vmatpush2.msra.mxu0 0.0
  %781 = vmatprep.subr.mxu0 0.0
  %782 = vmatpush2.msra.mxu0 0.0
  %783 = vmatprep.subr.mxu0 0.0
  %784 = vmatpush2.msra.mxu0 0.0
  %785 = vmatprep.subr.mxu0 0.0
  %786 = vmatpush2.msra.mxu0 0.0
  %787 = vmatprep.subr.mxu0 0.0
  %788 = vmatpush2.msra.mxu0 0.0
  %789 = vmatprep.mubr.f32.mxu0 0.0
  %790 = vmatmul.mubr.f32.gmra.mxu0 %v723
  %v791 = vpop.f32.mrf.mxu0
  %v792 = vadd.f32 0.0, %v791
  %v793 = vpop.f32.mrf.mxu0
  %v794 = vadd.f32 0.0, %v793
  %795 = vdwg.mxu0
  %v797 = vsel %vm206, %v717, 0
  %799 = vmatprep.subr.mxu0 0.0
  %800 = vmatpush1.msra.mxu0 0.0
  %801 = vmatprep.subr.mxu0 0.0
  %802 = vmatpush1.msra.mxu0 0.0
  %803 = vmatprep.subr.mxu0 0.0
  %804 = vmatpush1.msra.mxu0 0.0
  %805 = vmatprep.subr.mxu0 0.0
  %806 = vmatpush1.msra.mxu0 0.0
  %807 = vmatprep.subr.mxu0 0.0
  %808 = vmatpush1.msra.mxu0 0.0
  %809 = vmatprep.subr.mxu0 0.0
  %810 = vmatpush1.msra.mxu0 0.0
  %811 = vmatprep.subr.mxu0 0.0
  %812 = vmatpush1.msra.mxu0 0.0
  %813 = vmatprep.subr.mxu0 0.0
  %814 = vmatpush1.msra.mxu0 0.0
  %815 = vmatprep.subr.mxu0 0.0
  %816 = vmatpush1.msra.mxu0 0.0
  %817 = vmatprep.subr.mxu0 0.0
  %818 = vmatpush1.msra.mxu0 0.0
  %819 = vmatprep.subr.mxu0 0.0
  %820 = vmatpush1.msra.mxu0 0.0
  %821 = vmatprep.subr.mxu0 0.0
  %822 = vmatpush1.msra.mxu0 0.0
  %823 = vmatprep.subr.mxu0 0.0
  %824 = vmatpush1.msra.mxu0 0.0
  %825 = vmatprep.subr.mxu0 0.0
  %826 = vmatpush1.msra.mxu0 0.0
  %827 = vmatprep.subr.mxu0 %v721
  %828 = vmatpush1.msra.mxu0 %v720
  %829 = vmatprep.subr.mxu0 %v719
  %830 = vmatpush1.msra.mxu0 %v718
  %831 = vmatprep.subr.mxu0 0.0
  %832 = vmatpush2.msra.mxu0 0.0
  %833 = vmatprep.subr.mxu0 0.0
  %834 = vmatpush2.msra.mxu0 0.0
  %835 = vmatprep.subr.mxu0 0.0
  %836 = vmatpush2.msra.mxu0 0.0
  %837 = vmatprep.subr.mxu0 0.0
  %838 = vmatpush2.msra.mxu0 0.0
  %839 = vmatprep.subr.mxu0 0.0
  %840 = vmatpush2.msra.mxu0 0.0
  %841 = vmatprep.subr.mxu0 0.0
  %842 = vmatpush2.msra.mxu0 0.0
  %843 = vmatprep.subr.mxu0 0.0
  %844 = vmatpush2.msra.mxu0 0.0
  %845 = vmatprep.subr.mxu0 0.0
  %846 = vmatpush2.msra.mxu0 0.0
  %847 = vmatprep.subr.mxu0 0.0
  %848 = vmatpush2.msra.mxu0 0.0
  %849 = vmatprep.subr.mxu0 0.0
  %850 = vmatpush2.msra.mxu0 0.0
  %851 = vmatprep.subr.mxu0 0.0
  %852 = vmatpush2.msra.mxu0 0.0
  %853 = vmatprep.subr.mxu0 0.0
  %854 = vmatpush2.msra.mxu0 0.0
  %855 = vmatprep.subr.mxu0 0.0
  %856 = vmatpush2.msra.mxu0 0.0
  %857 = vmatprep.subr.mxu0 0.0
  %858 = vmatpush2.msra.mxu0 0.0
  %859 = vmatprep.subr.mxu0 0.0
  %860 = vmatpush2.msra.mxu0 0.0
  %861 = vmatprep.subr.mxu0 0.0
  %862 = vmatpush2.msra.mxu0 0.0
  %863 = vmatprep.mubr.f32.mxu0 0.0
  %864 = vmatmul.mubr.f32.gmra.mxu0 %v797
  %v865 = vpop.f32.mrf.mxu0
  %v866 = vadd.f32 0.0, %v865
  %v867 = vpop.f32.mrf.mxu0
  %v868 = vadd.f32 0.0, %v867
  %869 = vdwg.mxu0
  %v870 = vld [vmem:[%s1] sm:$0xff]
  %v871 = vld [vmem:[%s1 + $0x8] sm:$0xff]
  %v872 = vld [vmem:[%s1 + $0x10] sm:$0xff]
  %v873 = vld [vmem:[%s1 + $0x18] sm:$0xff]
  %v874 = vld [vmem:[%s1 + $0x20] sm:$0xff]
  %v875 = vld [vmem:[%s1 + $0x28] sm:$0xff]
  %v876 = vld [vmem:[%s1 + $0x30] sm:$0x11]
  %v877 = vld [vmem:[%s3] sm:$0xff]
  %v878 = vld [vmem:[%s3 + $0x8] sm:$0xff]
  %v879 = vld [vmem:[%s3 + $0x10] sm:$0xff]
  %v880 = vld [vmem:[%s3 + $0x18] sm:$0xff]
  %v881 = vld [vmem:[%s3 + $0x20] sm:$0xff]
  %v882 = vld [vmem:[%s3 + $0x28] sm:$0xff]
  %v883 = vld [vmem:[%s3 + $0x30] sm:$0xff]
  %v884 = vld [vmem:[%s3 + $0x38] sm:$0xff]
  %v885 = vld [vmem:[%s3 + $0x40] sm:$0xff]
  %v886 = vld [vmem:[%s3 + $0x48] sm:$0xff]
  %v887 = vld [vmem:[%s3 + $0x50] sm:$0xff]
  %v888 = vld [vmem:[%s3 + $0x58] sm:$0xff]
  %v889 = vld [vmem:[%s3 + $0x60] sm:$0xff]
  %v890 = vld [vmem:[%s3 + $0x68] sm:$0xff]
  %v891 = vld [vmem:[%s3 + $0x70] sm:$0xff]
  %v892 = vld [vmem:[%s3 + $0x78] sm:$0xff]
  %v893 = vld [vmem:[%s3 + $0x80] sm:$0xff]
  %v894 = vld [vmem:[%s3 + $0x88] sm:$0xff]
  %v895 = vld [vmem:[%s3 + $0x90] sm:$0xff]
  %v896 = vld [vmem:[%s3 + $0x98] sm:$0xff]
  %v897 = vld [vmem:[%s3 + $0xa0] sm:$0xff]
  %v898 = vld [vmem:[%s3 + $0xa8] sm:$0xff]
  %v899 = vld [vmem:[%s3 + $0xb0] sm:$0xff]
  %v900 = vld [vmem:[%s3 + $0xb8] sm:$0xff]
  %v901 = vld [vmem:[%s3 + $0xc0] sm:$0xff]
  %v902 = vld [vmem:[%s3 + $0xc8] sm:$0xff]
  %v903 = vld [vmem:[%s3 + $0xd0] sm:$0xff]
  %v904 = vld [vmem:[%s3 + $0xd8] sm:$0xff]
  %v905 = vld [vmem:[%s3 + $0xe0] sm:$0xff]
  %v906 = vld [vmem:[%s3 + $0xe8] sm:$0xff]
  %v907 = vld [vmem:[%s3 + $0xf0] sm:$0xff]
  %v908 = vld [vmem:[%s3 + $0xf8] sm:$0xff]
  %v916 = vunpack.c.l.b16 %v870
  %v917 = vunpack.c.h.b16 %v870
  %v918 = vunpack.c.l.b16 %v871
  %v919 = vunpack.c.h.b16 %v871
  %v920 = vunpack.c.l.b16 %v872
  %v921 = vunpack.c.h.b16 %v872
  %v922 = vunpack.c.l.b16 %v873
  %v923 = vunpack.c.h.b16 %v873
  %v924 = vunpack.c.l.b16 %v874
  %v925 = vunpack.c.h.b16 %v874
  %v926 = vunpack.c.l.b16 %v875
  %v927 = vunpack.c.h.b16 %v875
  %v928 = vunpack.c.l.b16 %v876
  %v929 = vunpack.c.h.b16 %v876
  %v930 = vpack.c.b16 %v918, %v916
  %v931 = vpack.c.b16 %v919, %v917
  %v932 = vpack.c.b16 %v922, %v920
  %v933 = vpack.c.b16 %v923, %v921
  %v934 = vpack.c.b16 %v926, %v924
  %v935 = vpack.c.b16 %v927, %v925
  %v936 = vpack.c.b16 %v928, %v928
  %v937 = vpack.c.b16 %v929, %v929
  %v978 = vunpack.c.l.b16 %v877
  %v979 = vunpack.c.h.b16 %v877
  %v980 = vunpack.c.l.b16 %v878
  %v981 = vunpack.c.h.b16 %v878
  %v982 = vunpack.c.l.b16 %v879
  %v983 = vunpack.c.h.b16 %v879
  %v984 = vunpack.c.l.b16 %v880
  %v985 = vunpack.c.h.b16 %v880
  %v986 = vunpack.c.l.b16 %v881
  %v987 = vunpack.c.h.b16 %v881
  %v988 = vunpack.c.l.b16 %v882
  %v989 = vunpack.c.h.b16 %v882
  %v990 = vunpack.c.l.b16 %v883
  %v991 = vunpack.c.h.b16 %v883
  %v992 = vunpack.c.l.b16 %v884
  %v993 = vunpack.c.h.b16 %v884
  %v994 = vunpack.c.l.b16 %v885
  %v995 = vunpack.c.h.b16 %v885
  %v996 = vunpack.c.l.b16 %v886
  %v997 = vunpack.c.h.b16 %v886
  %v998 = vunpack.c.l.b16 %v887
  %v999 = vunpack.c.h.b16 %v887
  %v1000 = vunpack.c.l.b16 %v888
  %v1001 = vunpack.c.h.b16 %v888
  %v1002 = vunpack.c.l.b16 %v889
  %v1003 = vunpack.c.h.b16 %v889
  %v1004 = vunpack.c.l.b16 %v890
  %v1005 = vunpack.c.h.b16 %v890
  %v1006 = vunpack.c.l.b16 %v891
  %v1007 = vunpack.c.h.b16 %v891
  %v1008 = vunpack.c.l.b16 %v892
  %v1009 = vunpack.c.h.b16 %v892
  %v1010 = vunpack.c.l.b16 %v893
  %v1011 = vunpack.c.h.b16 %v893
  %v1012 = vunpack.c.l.b16 %v894
  %v1013 = vunpack.c.h.b16 %v894
  %v1014 = vunpack.c.l.b16 %v895
  %v1015 = vunpack.c.h.b16 %v895
  %v1016 = vunpack.c.l.b16 %v896
  %v1017 = vunpack.c.h.b16 %v896
  %v1018 = vunpack.c.l.b16 %v897
  %v1019 = vunpack.c.h.b16 %v897
  %v1020 = vunpack.c.l.b16 %v898
  %v1021 = vunpack.c.h.b16 %v898
  %v1022 = vunpack.c.l.b16 %v899
  %v1023 = vunpack.c.h.b16 %v899
  %v1024 = vunpack.c.l.b16 %v900
  %v1025 = vunpack.c.h.b16 %v900
  %v1026 = vunpack.c.l.b16 %v901
  %v1027 = vunpack.c.h.b16 %v901
  %v1028 = vunpack.c.l.b16 %v902
  %v1029 = vunpack.c.h.b16 %v902
  %v1030 = vunpack.c.l.b16 %v903
  %v1031 = vunpack.c.h.b16 %v903
  %v1032 = vunpack.c.l.b16 %v904
  %v1033 = vunpack.c.h.b16 %v904
  %v1034 = vunpack.c.l.b16 %v905
  %v1035 = vunpack.c.h.b16 %v905
  %v1036 = vunpack.c.l.b16 %v906
  %v1037 = vunpack.c.h.b16 %v906
  %v1038 = vunpack.c.l.b16 %v907
  %v1039 = vunpack.c.h.b16 %v907
  %v1040 = vunpack.c.l.b16 %v908
  %v1041 = vunpack.c.h.b16 %v908
  %v1042 = vpack.c.b16 %v980, %v978
  %v1043 = vpack.c.b16 %v981, %v979
  %v1044 = vpack.c.b16 %v984, %v982
  %v1045 = vpack.c.b16 %v985, %v983
  %v1046 = vpack.c.b16 %v988, %v986
  %v1047 = vpack.c.b16 %v989, %v987
  %v1048 = vpack.c.b16 %v992, %v990
  %v1049 = vpack.c.b16 %v993, %v991
  %v1050 = vpack.c.b16 %v996, %v994
  %v1051 = vpack.c.b16 %v997, %v995
  %v1052 = vpack.c.b16 %v1000, %v998
  %v1053 = vpack.c.b16 %v1001, %v999
  %v1054 = vpack.c.b16 %v1004, %v1002
  %v1055 = vpack.c.b16 %v1005, %v1003
  %v1056 = vpack.c.b16 %v1008, %v1006
  %v1057 = vpack.c.b16 %v1009, %v1007
  %v1058 = vpack.c.b16 %v1012, %v1010
  %v1059 = vpack.c.b16 %v1013, %v1011
  %v1060 = vpack.c.b16 %v1016, %v1014
  %v1061 = vpack.c.b16 %v1017, %v1015
  %v1062 = vpack.c.b16 %v1020, %v1018
  %v1063 = vpack.c.b16 %v1021, %v1019
  %v1064 = vpack.c.b16 %v1024, %v1022
  %v1065 = vpack.c.b16 %v1025, %v1023
  %v1066 = vpack.c.b16 %v1028, %v1026
  %v1067 = vpack.c.b16 %v1029, %v1027
  %v1068 = vpack.c.b16 %v1032, %v1030
  %v1069 = vpack.c.b16 %v1033, %v1031
  %v1070 = vpack.c.b16 %v1036, %v1034
  %v1071 = vpack.c.b16 %v1037, %v1035
  %v1072 = vpack.c.b16 %v1040, %v1038
  %v1073 = vpack.c.b16 %v1041, %v1039
  %1106 = vmatprep.subr.bf16.mxu0 %v1057
  %1107 = vmatpush1.bf16.msra.mxu0 %v1056
  %1108 = vmatprep.subr.bf16.mxu0 %v1055
  %1109 = vmatpush1.bf16.msra.mxu0 %v1054
  %1110 = vmatprep.subr.bf16.mxu0 %v1053
  %1111 = vmatpush1.bf16.msra.mxu0 %v1052
  %1112 = vmatprep.subr.bf16.mxu0 %v1051
  %1113 = vmatpush1.bf16.msra.mxu0 %v1050
  %1114 = vmatprep.subr.bf16.mxu0 %v1049
  %1115 = vmatpush1.bf16.msra.mxu0 %v1048
  %1116 = vmatprep.subr.bf16.mxu0 %v1047
  %1117 = vmatpush1.bf16.msra.mxu0 %v1046
  %1118 = vmatprep.subr.bf16.mxu0 %v1045
  %1119 = vmatpush1.bf16.msra.mxu0 %v1044
  %1120 = vmatprep.subr.bf16.mxu0 %v1043
  %1121 = vmatpush1.bf16.msra.mxu0 %v1042
  %1122 = vmatprep.subr.bf16.mxu0 %v1073
  %1123 = vmatpush2.bf16.msra.mxu0 %v1072
  %1124 = vmatprep.subr.bf16.mxu0 %v1071
  %1125 = vmatpush2.bf16.msra.mxu0 %v1070
  %1126 = vmatprep.subr.bf16.mxu0 %v1069
  %1127 = vmatpush2.bf16.msra.mxu0 %v1068
  %1128 = vmatprep.subr.bf16.mxu0 %v1067
  %1129 = vmatpush2.bf16.msra.mxu0 %v1066
  %1130 = vmatprep.subr.bf16.mxu0 %v1065
  %1131 = vmatpush2.bf16.msra.mxu0 %v1064
  %1132 = vmatprep.subr.bf16.mxu0 %v1063
  %1133 = vmatpush2.bf16.msra.mxu0 %v1062
  %1134 = vmatprep.subr.bf16.mxu0 %v1061
  %1135 = vmatpush2.bf16.msra.mxu0 %v1060
  %1136 = vmatprep.subr.bf16.mxu0 %v1059
  %1137 = vmatpush2.bf16.msra.mxu0 %v1058
  %1138 = vmatprep.mubr.bf16.mxu0 %v931
  %1139 = vmatmul.mubr.bf16.gmra.mxu0 %v930
  %v1140 = vpop.f32.mrf.mxu0
  %v1141 = vadd.f32 0.0, %v1140
  %v1142 = vpop.f32.mrf.mxu0
  %v1143 = vadd.f32 0.0, %v1142
  %v1144 = vpop.f32.mrf.mxu0
  %v1145 = vadd.f32 0.0, %v1144
  %v1146 = vpop.f32.mrf.mxu0
  %v1147 = vadd.f32 0.0, %v1146
  %1148 = vmatprep.mubr.bf16.mxu0 %v933
  %1149 = vmatmul.mubr.bf16.gmra.mxu0 %v932
  %v1150 = vpop.f32.mrf.mxu0
  %v1151 = vadd.f32 0.0, %v1150
  %v1152 = vpop.f32.mrf.mxu0
  %v1153 = vadd.f32 0.0, %v1152
  %v1154 = vpop.f32.mrf.mxu0
  %v1155 = vadd.f32 0.0, %v1154
  %v1156 = vpop.f32.mrf.mxu0
  %v1157 = vadd.f32 0.0, %v1156
  %1158 = vmatprep.mubr.bf16.mxu0 %v935
  %1159 = vmatmul.mubr.bf16.gmra.mxu0 %v934
  %v1160 = vpop.f32.mrf.mxu0
  %v1161 = vadd.f32 0.0, %v1160
  %v1162 = vpop.f32.mrf.mxu0
  %v1163 = vadd.f32 0.0, %v1162
  %v1164 = vpop.f32.mrf.mxu0
  %v1165 = vadd.f32 0.0, %v1164
  %v1166 = vpop.f32.mrf.mxu0
  %v1167 = vadd.f32 0.0, %v1166
  %1168 = vmatprep.mubr.bf16.mxu0 %v937
  %1169 = vmatmul.mubr.bf16.gmra.mxu0 %v936
  %v1170 = vpop.f32.mrf.mxu0
  %v1171 = vadd.f32 0.0, %v1170
  %v1172 = vpop.f32.mrf.mxu0
  %v1173 = vadd.f32 0.0, %v1172
  %v1174 = vpop.f32.mrf.mxu0
  %v1175 = vpop.f32.mrf.mxu0
  %1176 = vdwg.mxu0
  %v1177 = vlaneseq
  %v1178 = vshrl.u32 %v1177, 7
  %v1179 = vsub.s32 0, %v1178
  %v1180 = vrot.slane %v792, %v1179
  %v1181 = vlaneseq
  %v1182 = vshrl.u32 %v1181, 7
  %v1183 = vsub.s32 0, %v1182
  %v1184 = vrot.slane %v794, %v1183
  %v1185 = vmul.f32 %v1141, %v1180
  %v1186 = vmul.f32 %v1143, %v1184
  %v1187 = vmul.f32 %v1145, %v1180
  %v1188 = vmul.f32 %v1147, %v1184
  %v1189 = vmul.f32 %v1151, %v1180
  %v1190 = vmul.f32 %v1153, %v1184
  %v1191 = vmul.f32 %v1155, %v1180
  %v1192 = vmul.f32 %v1157, %v1184
  %v1193 = vmul.f32 %v1161, %v1180
  %v1194 = vmul.f32 %v1163, %v1184
  %v1195 = vmul.f32 %v1165, %v1180
  %v1196 = vmul.f32 %v1167, %v1184
  %v1197 = vmul.f32 %v1171, %v1180
  %v1198 = vmul.f32 %v1173, %v1184
  %v1199 = vlaneseq
  %v1200 = vshrl.u32 %v1199, 7
  %v1201 = vsub.s32 0, %v1200
  %v1202 = vrot.slane %v866, %v1201
  %v1203 = vlaneseq
  %v1204 = vshrl.u32 %v1203, 7
  %v1205 = vsub.s32 0, %v1204
  %v1206 = vrot.slane %v868, %v1205
  %v1207 = vadd.f32 %v1185, %v1202
  %v1208 = vadd.f32 %v1186, %v1206
  %v1209 = vadd.f32 %v1187, %v1202
  %v1210 = vadd.f32 %v1188, %v1206
  %v1211 = vadd.f32 %v1189, %v1202
  %v1212 = vadd.f32 %v1190, %v1206
  %v1213 = vadd.f32 %v1191, %v1202
  %v1214 = vadd.f32 %v1192, %v1206
  %v1215 = vadd.f32 %v1193, %v1202
  %v1216 = vadd.f32 %v1194, %v1206
  %v1217 = vadd.f32 %v1195, %v1202
  %v1218 = vadd.f32 %v1196, %v1206
  %v1219 = vadd.f32 %v1197, %v1202
  %v1220 = vadd.f32 %v1198, %v1206
  %vm1221 = vcmp.ge.f32.partialorder %v1207, 0.0
  %vm1222 = vcmp.ge.f32.partialorder %v1208, 0.0
  %vm1223 = vcmp.ge.f32.partialorder %v1209, 0.0
  %vm1224 = vcmp.ge.f32.partialorder %v1210, 0.0
  %vm1225 = vcmp.ge.f32.partialorder %v1211, 0.0
  %vm1226 = vcmp.ge.f32.partialorder %v1212, 0.0
  %vm1227 = vcmp.ge.f32.partialorder %v1213, 0.0
  %vm1228 = vcmp.ge.f32.partialorder %v1214, 0.0
  %vm1229 = vcmp.ge.f32.partialorder %v1215, 0.0
  %vm1230 = vcmp.ge.f32.partialorder %v1216, 0.0
  %vm1231 = vcmp.ge.f32.partialorder %v1217, 0.0
  %vm1232 = vcmp.ge.f32.partialorder %v1218, 0.0
  %vm1233 = vcmp.ge.f32.partialorder %v1219, 0.0
  %vm1234 = vcmp.ge.f32.partialorder %v1220, 0.0
  %v1235 = vmul.f32 %v1207, 0.2
  %v1236 = vmul.f32 %v1208, 0.2
  %v1237 = vmul.f32 %v1209, 0.2
  %v1238 = vmul.f32 %v1210, 0.2
  %v1239 = vmul.f32 %v1211, 0.2
  %v1240 = vmul.f32 %v1212, 0.2
  %v1241 = vmul.f32 %v1213, 0.2
  %v1242 = vmul.f32 %v1214, 0.2
  %v1243 = vmul.f32 %v1215, 0.2
  %v1244 = vmul.f32 %v1216, 0.2
  %v1245 = vmul.f32 %v1217, 0.2
  %v1246 = vmul.f32 %v1218, 0.2
  %v1247 = vmul.f32 %v1219, 0.2
  %v1248 = vmul.f32 %v1220, 0.2
  %v1249 = vsel %vm1221, %v1207, %v1235
  %v1250 = vsel %vm1222, %v1208, %v1236
  %v1251 = vsel %vm1223, %v1209, %v1237
  %v1252 = vsel %vm1224, %v1210, %v1238
  %v1253 = vsel %vm1225, %v1211, %v1239
  %v1254 = vsel %vm1226, %v1212, %v1240
  %v1255 = vsel %vm1227, %v1213, %v1241
  %v1256 = vsel %vm1228, %v1214, %v1242
  %v1257 = vsel %vm1229, %v1215, %v1243
  %v1258 = vsel %vm1230, %v1216, %v1244
  %v1259 = vsel %vm1231, %v1217, %v1245
  %v1260 = vsel %vm1232, %v1218, %v1246
  %v1261 = vsel %vm1233, %v1219, %v1247
  %v1262 = vsel %vm1234, %v1220, %v1248
  %v1263 = vpack.c.bf16 %v1251, %v1249
  %v1264 = vpack.c.bf16 %v1252, %v1250
  %v1265 = vpack.c.bf16 %v1255, %v1253
  %v1266 = vpack.c.bf16 %v1256, %v1254
  %v1267 = vpack.c.bf16 %v1259, %v1257
  %v1268 = vpack.c.bf16 %v1260, %v1258
  %v1269 = vpack.c.bf16 %v1261, %v1261
  %v1270 = vpack.c.bf16 %v1262, %v1262
  %v1271 = vld [vmem:[%s7] sm:$0xf]
  %v1272 = vld [vmem:[%s7 + $0x4] sm:$0xf]
  %v1273 = vld [vmem:[%s7 + $0x8] sm:$0xf]
  %v1274 = vld [vmem:[%s7 + $0xc] sm:$0xf]
  %v1275 = vld [vmem:[%s7 + $0x10] sm:$0xf]
  %v1276 = vld [vmem:[%s7 + $0x14] sm:$0xf]
  %v1277 = vld [vmem:[%s7 + $0x18] sm:$0xf]
  %v1278 = vld [vmem:[%s7 + $0x1c] sm:$0xf]
  %v1279 = vld [vmem:[%s7 + $0x20] sm:$0xf]
  %v1280 = vld [vmem:[%s7 + $0x24] sm:$0xf]
  %v1281 = vld [vmem:[%s7 + $0x28] sm:$0xf]
  %v1282 = vld [vmem:[%s7 + $0x2c] sm:$0xf]
  %v1283 = vld [vmem:[%s7 + $0x30] sm:$0xf]
  %v1284 = vld [vmem:[%s7 + $0x34] sm:$0xf]
  %v1285 = vld [vmem:[%s7 + $0x38] sm:$0xf]
  %v1286 = vld [vmem:[%s7 + $0x3c] sm:$0xf]
  %v1287 = vld [vmem:[%s7 + $0x40] sm:$0xf]
  %v1288 = vld [vmem:[%s7 + $0x44] sm:$0xf]
  %v1289 = vld [vmem:[%s7 + $0x48] sm:$0xf]
  %v1290 = vld [vmem:[%s7 + $0x4c] sm:$0xf]
  %v1291 = vld [vmem:[%s7 + $0x50] sm:$0xf]
  %v1292 = vld [vmem:[%s7 + $0x54] sm:$0xf]
  %v1293 = vld [vmem:[%s7 + $0x58] sm:$0xf]
  %v1294 = vld [vmem:[%s7 + $0x5c] sm:$0xf]
  %v1295 = vld [vmem:[%s7 + $0x60] sm:$0xf]
  %v1296 = vld [vmem:[%s7 + $0x64] sm:$0xf]
  %v1297 = vld [vmem:[%s7 + $0x68] sm:$0xf]
  %v1298 = vld [vmem:[%s7 + $0x6c] sm:$0xf]
  %v1299 = vld [vmem:[%s7 + $0x70] sm:$0xf]
  %v1300 = vld [vmem:[%s7 + $0x74] sm:$0xf]
  %v1301 = vld [vmem:[%s7 + $0x78] sm:$0xf]
  %v1302 = vld [vmem:[%s7 + $0x7c] sm:$0xf]
  %v1335 = vunpack.c.l.b16 %v1271
  %v1336 = vunpack.c.l.b16 %v1272
  %v1337 = vunpack.c.l.b16 %v1273
  %v1338 = vunpack.c.l.b16 %v1274
  %v1339 = vunpack.c.l.b16 %v1275
  %v1340 = vunpack.c.l.b16 %v1276
  %v1341 = vunpack.c.l.b16 %v1277
  %v1342 = vunpack.c.l.b16 %v1278
  %v1343 = vunpack.c.l.b16 %v1279
  %v1344 = vunpack.c.l.b16 %v1280
  %v1345 = vunpack.c.l.b16 %v1281
  %v1346 = vunpack.c.l.b16 %v1282
  %v1347 = vunpack.c.l.b16 %v1283
  %v1348 = vunpack.c.l.b16 %v1284
  %v1349 = vunpack.c.l.b16 %v1285
  %v1350 = vunpack.c.l.b16 %v1286
  %v1351 = vunpack.c.l.b16 %v1287
  %v1352 = vunpack.c.l.b16 %v1288
  %v1353 = vunpack.c.l.b16 %v1289
  %v1354 = vunpack.c.l.b16 %v1290
  %v1355 = vunpack.c.l.b16 %v1291
  %v1356 = vunpack.c.l.b16 %v1292
  %v1357 = vunpack.c.l.b16 %v1293
  %v1358 = vunpack.c.l.b16 %v1294
  %v1359 = vunpack.c.l.b16 %v1295
  %v1360 = vunpack.c.l.b16 %v1296
  %v1361 = vunpack.c.l.b16 %v1297
  %v1362 = vunpack.c.l.b16 %v1298
  %v1363 = vunpack.c.l.b16 %v1299
  %v1364 = vunpack.c.l.b16 %v1300
  %v1365 = vunpack.c.l.b16 %v1301
  %v1366 = vunpack.c.l.b16 %v1302
  %v1367 = vpack.c.b16 %v1336, %v1335
  %v1368 = vpack.c.b16 %v1338, %v1337
  %v1369 = vpack.c.b16 %v1340, %v1339
  %v1370 = vpack.c.b16 %v1342, %v1341
  %v1371 = vpack.c.b16 %v1344, %v1343
  %v1372 = vpack.c.b16 %v1346, %v1345
  %v1373 = vpack.c.b16 %v1348, %v1347
  %v1374 = vpack.c.b16 %v1350, %v1349
  %v1375 = vpack.c.b16 %v1352, %v1351
  %v1376 = vpack.c.b16 %v1354, %v1353
  %v1377 = vpack.c.b16 %v1356, %v1355
  %v1378 = vpack.c.b16 %v1358, %v1357
  %v1379 = vpack.c.b16 %v1360, %v1359
  %v1380 = vpack.c.b16 %v1362, %v1361
  %v1381 = vpack.c.b16 %v1364, %v1363
  %v1382 = vpack.c.b16 %v1366, %v1365
  %1399 = vmatprep.subr.bf16.mxu0 0
  %1400 = vmatpush1.bf16.msra.mxu0 %v1374
  %1401 = vmatprep.subr.bf16.mxu0 0
  %1402 = vmatpush1.bf16.msra.mxu0 %v1373
  %1403 = vmatprep.subr.bf16.mxu0 0
  %1404 = vmatpush1.bf16.msra.mxu0 %v1372
  %1405 = vmatprep.subr.bf16.mxu0 0
  %1406 = vmatpush1.bf16.msra.mxu0 %v1371
  %1407 = vmatprep.subr.bf16.mxu0 0
  %1408 = vmatpush1.bf16.msra.mxu0 %v1370
  %1409 = vmatprep.subr.bf16.mxu0 0
  %1410 = vmatpush1.bf16.msra.mxu0 %v1369
  %1411 = vmatprep.subr.bf16.mxu0 0
  %1412 = vmatpush1.bf16.msra.mxu0 %v1368
  %1413 = vmatprep.subr.bf16.mxu0 0
  %1414 = vmatpush1.bf16.msra.mxu0 %v1367
  %1415 = vmatprep.subr.bf16.mxu0 0
  %1416 = vmatpush2.bf16.msra.mxu0 %v1382
  %1417 = vmatprep.subr.bf16.mxu0 0
  %1418 = vmatpush2.bf16.msra.mxu0 %v1381
  %1419 = vmatprep.subr.bf16.mxu0 0
  %1420 = vmatpush2.bf16.msra.mxu0 %v1380
  %1421 = vmatprep.subr.bf16.mxu0 0
  %1422 = vmatpush2.bf16.msra.mxu0 %v1379
  %1423 = vmatprep.subr.bf16.mxu0 0
  %1424 = vmatpush2.bf16.msra.mxu0 %v1378
  %1425 = vmatprep.subr.bf16.mxu0 0
  %1426 = vmatpush2.bf16.msra.mxu0 %v1377
  %1427 = vmatprep.subr.bf16.mxu0 0
  %1428 = vmatpush2.bf16.msra.mxu0 %v1376
  %1429 = vmatprep.subr.bf16.mxu0 0
  %1430 = vmatpush2.bf16.msra.mxu0 %v1375
  %1431 = vmatprep.mubr.bf16.mxu0 %v1264
  %1432 = vmatmul.mubr.bf16.gmra.mxu0 %v1263
  %v1433 = vpop.f32.mrf.mxu0
  %v1434 = vadd.f32 0.0, %v1433
  %v1435 = vpop.f32.mrf.mxu0
  %v1436 = vpop.f32.mrf.mxu0
  %v1437 = vadd.f32 0.0, %v1436
  %v1438 = vpop.f32.mrf.mxu0
  %1439 = vmatprep.mubr.bf16.mxu0 %v1266
  %1440 = vmatmul.mubr.bf16.gmra.mxu0 %v1265
  %v1441 = vpop.f32.mrf.mxu0
  %v1442 = vadd.f32 0.0, %v1441
  %v1443 = vpop.f32.mrf.mxu0
  %v1444 = vpop.f32.mrf.mxu0
  %v1445 = vadd.f32 0.0, %v1444
  %v1446 = vpop.f32.mrf.mxu0
  %1447 = vmatprep.mubr.bf16.mxu0 %v1268
  %1448 = vmatmul.mubr.bf16.gmra.mxu0 %v1267
  %v1449 = vpop.f32.mrf.mxu0
  %v1450 = vadd.f32 0.0, %v1449
  %v1451 = vpop.f32.mrf.mxu0
  %v1452 = vpop.f32.mrf.mxu0
  %v1453 = vadd.f32 0.0, %v1452
  %v1454 = vpop.f32.mrf.mxu0
  %1455 = vmatprep.mubr.bf16.mxu0 %v1270
  %1456 = vmatmul.mubr.bf16.gmra.mxu0 %v1269
  %v1457 = vpop.f32.mrf.mxu0
  %v1458 = vadd.f32 0.0, %v1457
  %v1459 = vpop.f32.mrf.mxu0
  %v1460 = vpop.f32.mrf.mxu0
  %v1461 = vpop.f32.mrf.mxu0
  %1462 = vdwg.mxu0
  %vm1463 = vcmask 261120
  %v1464 = vsel %vm1463, %v1434, 0.0
  %v1465 = vsel %vm1463, %v1437, 0.0
  %v1466 = vadd.f32 %v1464, %v1465
  %v1467 = vsel %vm1463, %v1442, 0.0
  %v1468 = vadd.f32 %v1466, %v1467
  %v1469 = vsel %vm1463, %v1445, 0.0
  %v1470 = vadd.f32 %v1468, %v1469
  %v1471 = vsel %vm1463, %v1450, 0.0
  %v1472 = vadd.f32 %v1470, %v1471
  %v1473 = vsel %vm1463, %v1453, 0.0
  %v1474 = vadd.f32 %v1472, %v1473
  %vm1475 = vcmask 254976
  %v1476 = vsel %vm1475, %v1458, 0.0
  %v1477 = vadd.f32 %v1474, %v1476
  %v1478 = vrot.slane %v1477, 4
  %v1479 = vadd.f32 %v1477, %v1478
  %v1480 = vrot.slane %v1479, 2
  %v1481 = vadd.f32 %v1479, %v1480
  %v1482 = vrot.slane %v1481, 1
  %v1483 = vadd.f32 %v1481, %v1482
  %v1484 = vmul.f32 %v1483, 0.02
  %v1485 = vmul.f32 %v1434, %v1434
  %v1486 = vmul.f32 %v1437, %v1437
  %v1487 = vmul.f32 %v1442, %v1442
  %v1488 = vmul.f32 %v1445, %v1445
  %v1489 = vmul.f32 %v1450, %v1450
  %v1490 = vmul.f32 %v1453, %v1453
  %v1491 = vmul.f32 %v1458, %v1458
  %v1492 = vsel %vm1463, %v1485, 0.0
  %v1493 = vsel %vm1463, %v1486, 0.0
  %v1494 = vadd.f32 %v1492, %v1493
  %v1495 = vsel %vm1463, %v1487, 0.0
  %v1496 = vadd.f32 %v1494, %v1495
  %v1497 = vsel %vm1463, %v1488, 0.0
  %v1498 = vadd.f32 %v1496, %v1497
  %v1499 = vsel %vm1463, %v1489, 0.0
  %v1500 = vadd.f32 %v1498, %v1499
  %v1501 = vsel %vm1463, %v1490, 0.0
  %v1502 = vadd.f32 %v1500, %v1501
  %v1503 = vsel %vm1475, %v1491, 0.0
  %v1504 = vadd.f32 %v1502, %v1503
  %v1505 = vrot.slane %v1504, 4
  %v1506 = vadd.f32 %v1504, %v1505
  %v1507 = vrot.slane %v1506, 2
  %v1508 = vadd.f32 %v1506, %v1507
  %v1509 = vrot.slane %v1508, 1
  %v1510 = vadd.f32 %v1508, %v1509
  %v1511 = vmul.f32 %v1510, 0.02
  %v1512 = vmul.f32 %v1484, %v1484
  %v1513 = vsub.f32 %v1511, %v1512
  %v1514 = vld [vmem:[%s8] sm:$0x1]
  %v1515 = vadd.f32 %v1513, 1e-05
  %v1516 = vrsqrt.pop %v1515
  %v1517 = vmul.f32 %v1514, %v1516
  %v1518 = vld [vmem:[%s9] sm:$0x1]
  %v1519 = vmul.f32 %v1484, %v1517
  %v1520 = vsub.f32 %v1518, %v1519
  %v1522 = vlaneseq
  %v1523 = vshrl.u32 %v1522, 7
  %v1524 = vsub.s32 0, %v1523
  %v1525 = vrot.slane %v1517, %v1524
  %v1527 = vmul.f32 %v1434, %v1525
  %v1528 = vmul.f32 %v1437, %v1525
  %v1529 = vmul.f32 %v1442, %v1525
  %v1530 = vmul.f32 %v1445, %v1525
  %v1531 = vmul.f32 %v1450, %v1525
  %v1532 = vmul.f32 %v1453, %v1525
  %v1533 = vmul.f32 %v1458, %v1525
  %v1535 = vlaneseq
  %v1536 = vshrl.u32 %v1535, 7
  %v1537 = vsub.s32 0, %v1536
  %v1538 = vrot.slane %v1520, %v1537
  %v1540 = vadd.f32 %v1527, %v1538
  %v1541 = vadd.f32 %v1528, %v1538
  %v1542 = vadd.f32 %v1529, %v1538
  %v1543 = vadd.f32 %v1530, %v1538
  %v1544 = vadd.f32 %v1531, %v1538
  %v1545 = vadd.f32 %v1532, %v1538
  %v1546 = vadd.f32 %v1533, %v1538
  %vm1547 = vcmp.ge.f32.partialorder %v1540, 0.0
  %vm1548 = vcmp.ge.f32.partialorder %v1541, 0.0
  %vm1549 = vcmp.ge.f32.partialorder %v1542, 0.0
  %vm1550 = vcmp.ge.f32.partialorder %v1543, 0.0
  %vm1551 = vcmp.ge.f32.partialorder %v1544, 0.0
  %vm1552 = vcmp.ge.f32.partialorder %v1545, 0.0
  %vm1553 = vcmp.ge.f32.partialorder %v1546, 0.0
  %v1554 = vmul.f32 %v1540, 0.2
  %v1555 = vmul.f32 %v1541, 0.2
  %v1556 = vmul.f32 %v1542, 0.2
  %v1557 = vmul.f32 %v1543, 0.2
  %v1558 = vmul.f32 %v1544, 0.2
  %v1559 = vmul.f32 %v1545, 0.2
  %v1560 = vmul.f32 %v1546, 0.2
  %v1561 = vsel %vm1547, %v1540, %v1554
  %v1562 = vsel %vm1548, %v1541, %v1555
  %v1563 = vsel %vm1549, %v1542, %v1556
  %v1564 = vsel %vm1550, %v1543, %v1557
  %v1565 = vsel %vm1551, %v1544, %v1558
  %v1566 = vsel %vm1552, %v1545, %v1559
  %v1567 = vsel %vm1553, %v1546, %v1560
  %v1568 = vld [vmem:[%s10] sm:$0xff]
  %v1569 = vld [vmem:[%s10 + $0x8] sm:$0xff]
  %v1570 = vld [vmem:[%s10 + $0x10] sm:$0xff]
  %v1571 = vld [vmem:[%s10 + $0x18] sm:$0xff]
  %v1572 = vld [vmem:[%s10 + $0x20] sm:$0xff]
  %v1573 = vld [vmem:[%s10 + $0x28] sm:$0xff]
  %v1574 = vld [vmem:[%s10 + $0x30] sm:$0x3]
  %v1575 = vmul.f32 %v1561, %v1568
  %v1576 = vmul.f32 %v1562, %v1569
  %v1577 = vmul.f32 %v1563, %v1570
  %v1578 = vmul.f32 %v1564, %v1571
  %v1579 = vmul.f32 %v1565, %v1572
  %v1580 = vmul.f32 %v1566, %v1573
  %v1581 = vmul.f32 %v1567, %v1574
  %v1582 = vld [vmem:[%s11] sm:$0x3]
  %vm1583 = vcmask 408576
  %v1585 = vsel %vm1583, %v1582, 0
  %vm1587 = vcmask 1041408
  %v1589 = vsel %vm1587, %v1581, 0
  %1591 = vmatprep.subr.mxu0 0.0
  %1592 = vmatpush1.msra.mxu0 0.0
  %1593 = vmatprep.subr.mxu0 0.0
  %1594 = vmatpush1.msra.mxu0 0.0
  %1595 = vmatprep.subr.mxu0 0.0
  %1596 = vmatpush1.msra.mxu0 0.0
  %1597 = vmatprep.subr.mxu0 0.0
  %1598 = vmatpush1.msra.mxu0 0.0
  %1599 = vmatprep.subr.mxu0 0.0
  %1600 = vmatpush1.msra.mxu0 0.0
  %1601 = vmatprep.subr.mxu0 0.0
  %1602 = vmatpush1.msra.mxu0 0.0
  %1603 = vmatprep.subr.mxu0 0.0
  %1604 = vmatpush1.msra.mxu0 0.0
  %1605 = vmatprep.subr.mxu0 0.0
  %1606 = vmatpush1.msra.mxu0 0.0
  %1607 = vmatprep.subr.mxu0 0.0
  %1608 = vmatpush1.msra.mxu0 0.0
  %1609 = vmatprep.subr.mxu0 0.0
  %1610 = vmatpush1.msra.mxu0 %v1589
  %1611 = vmatprep.subr.mxu0 0.0
  %1612 = vmatpush1.msra.mxu0 %v1580
  %1613 = vmatprep.subr.mxu0 0.0
  %1614 = vmatpush1.msra.mxu0 %v1579
  %1615 = vmatprep.subr.mxu0 0.0
  %1616 = vmatpush1.msra.mxu0 %v1578
  %1617 = vmatprep.subr.mxu0 0.0
  %1618 = vmatpush1.msra.mxu0 %v1577
  %1619 = vmatprep.subr.mxu0 0.0
  %1620 = vmatpush1.msra.mxu0 %v1576
  %1621 = vmatprep.subr.mxu0 0.0
  %1622 = vmatpush1.msra.mxu0 %v1575
  %1623 = vmatprep.subr.mxu0 0.0
  %1624 = vmatpush2.msra.mxu0 0.0
  %1625 = vmatprep.subr.mxu0 0.0
  %1626 = vmatpush2.msra.mxu0 0.0
  %1627 = vmatprep.subr.mxu0 0.0
  %1628 = vmatpush2.msra.mxu0 0.0
  %1629 = vmatprep.subr.mxu0 0.0
  %1630 = vmatpush2.msra.mxu0 0.0
  %1631 = vmatprep.subr.mxu0 0.0
  %1632 = vmatpush2.msra.mxu0 0.0
  %1633 = vmatprep.subr.mxu0 0.0
  %1634 = vmatpush2.msra.mxu0 0.0
  %1635 = vmatprep.subr.mxu0 0.0
  %1636 = vmatpush2.msra.mxu0 0.0
  %1637 = vmatprep.subr.mxu0 0.0
  %1638 = vmatpush2.msra.mxu0 0.0
  %1639 = vmatprep.subr.mxu0 0.0
  %1640 = vmatpush2.msra.mxu0 0.0
  %1641 = vmatprep.subr.mxu0 0.0
  %1642 = vmatpush2.msra.mxu0 0.0
  %1643 = vmatprep.subr.mxu0 0.0
  %1644 = vmatpush2.msra.mxu0 0.0
  %1645 = vmatprep.subr.mxu0 0.0
  %1646 = vmatpush2.msra.mxu0 0.0
  %1647 = vmatprep.subr.mxu0 0.0
  %1648 = vmatpush2.msra.mxu0 0.0
  %1649 = vmatprep.subr.mxu0 0.0
  %1650 = vmatpush2.msra.mxu0 0.0
  %1651 = vmatprep.subr.mxu0 0.0
  %1652 = vmatpush2.msra.mxu0 0.0
  %1653 = vmatprep.subr.mxu0 0.0
  %1654 = vmatpush2.msra.mxu0 0.0
  %1655 = vmatprep.mubr.f32.mxu0 0.0
  %1656 = vmatmul.mubr.f32.gmra.mxu0 %v1585
  %v1657 = vpop.f32.mrf.mxu0
  %v1658 = vadd.f32 0.0, %v1657
  %v1659 = vpop.f32.mrf.mxu0
  %1660 = vdwg.mxu0
  %v1661 = vsel %vm1475, %v1658, 0.0
  %1662 = vadd.xlane.f32.xlu0 %v1661
  %v1663 = vpop.xlane.xlu0 %1662
  %v1664 = vld [vmem:[#allocation2] sm:$0x1]
  %v1666 = vlaneseq
  %v1667 = vshrl.u32 %v1666, 7
  %v1668 = vsub.s32 0, %v1667
  %v1669 = vrot.slane %v1664, %v1668
  %v1671 = vadd.f32 %v1663, %v1669
  %vm1672 = vcmask 1024
  %1673 = vst.msk [vmem:[%s13] sm:$0x3] %vm1672, %v1671
  // Predicated region
  $region54: #{discriminator_forward.1} parent=0 // pred_check
    _
  $region55: #{discriminator_forward.1} parent=0 // pred_check_branch
    %1675 = sbr.rel (0) target = $region57
  $region56: #{discriminator_forward.1} parent=0 // pred_region
    _
  $region57: #{discriminator_forward.1} parent=0 // pred_fallthru
    _
  // Predicated region
  $region58: #{discriminator_forward.1} parent=0 // pred_check
    _
  $region59: #{discriminator_forward.1} parent=0 // pred_check_branch
    %1677 = sbr.rel (0) target = $region61
  $region60: #{discriminator_forward.1} parent=0 // pred_region
    _
  $region61: #{discriminator_forward.1} parent=0 // pred_fallthru
    _

</llo_original>
